<compile_context>
chip_gen: v6e
topology: v6e:2x2x1
jax: 0.10.0
libtpu: 0.0.40
codegen_flags: <defaults>
</compile_context>

<pallas_src>
import functools

import jax
import jax.numpy as jnp
import numpy as np
from jax import lax
from jax.experimental import pallas as pl
from jax.experimental.pallas import tpu as pltpu


def resblock_kernel(xflat_ref, w_ab_ref, b_ab_ref, w2_ref, b2_ref, out_ref,
                    *, hout, wh, cin, cout, b_tile):
    wout = wh - 1
    m = hout * wh                        # matmul N dim (one spare column per row)

    # Column validity (the spare column per row is garbage after stage 1; once
    # zeroed it becomes the left/right zero padding of skip_conv2).
    col = lax.broadcasted_iota(jnp.int32, (1, m), 1)
    col_valid = (col % wh) < wout

    w_ab = w_ab_ref[...]                 # (2*Cout, 9*Cin)  bf16
    b_ab = b_ab_ref[...]                 # (2*Cout, 1)      f32
    w2 = w2_ref[...]                     # (Cout, 9*Cout)   bf16
    b2 = b2_ref[...]                     # (Cout, 1)        f32

    for i in range(b_tile):
        # -- stage 0: im2col of the stride-2 3x3 taps: contiguous lane slices --
        taps = []
        for di in range(3):
            for dj in range(3):
                p = (di % 2) * 2 + (dj % 2)            # parity plane
                off = (di // 2) * wh + (dj // 2)       # constant lane offset
                taps.append(xflat_ref[i, p, :, off:off + m])       # (Cin, m)
        p_t = jnp.concatenate(taps, axis=0).astype(jnp.bfloat16)   # (9*Cin, m)

        # -- stage 1: ONE bf16 MXU matmul covers both branches, channel-major --
        #   rows [0, Cout)       = BN(Conv1x1(AvgPool3x3s2(x)))  (pre-folded)
        #   rows [Cout, 2*Cout)  = skip_conv1 (3x3, stride 2)
        first = jnp.dot(w_ab, p_t, preferred_element_type=jnp.float32) + b_ab
        a = first[:cout, :]                                        # (Cout, m)
        y1 = jnp.where(col_valid, first[cout:, :], 0.0)            # (Cout, m)

        # -- stage 2: skip_conv2 (3x3, stride 1, pad 1) ------------------------
        # Zero-frame y1 along lanes; the per-row spare (zeroed) column plays the
        # role of the horizontal pad, so the 9 shifted taps are plain static
        # lane-offset slices with no masking.
        zpad = jnp.zeros((cout, wh + 1), jnp.float32)
        ypad = jnp.concatenate([zpad, y1, zpad], axis=1)           # (Cout, m+2*wh+2)
        pieces = []
        for di in range(3):
            for dj in range(3):
                off2 = (wh + 1) + (di - 1) * wh + (dj - 1)
                pieces.append(ypad[:, off2:off2 + m])              # (Cout, m)
        slab = jnp.concatenate(pieces, axis=0).astype(jnp.bfloat16)  # (9*Cout, m)
        y2 = jnp.dot(w2, slab, preferred_element_type=jnp.float32) + b2

        # -- channel-major store, no transpose ---------------------------------
        out_ref[i] = (a + y2).astype(out_ref.dtype)                # (Cout, m)


def _vmem_limit_bytes():
    cap = 64 << 20
    try:
        info = pltpu.get_tpu_info()
        cap = int(getattr(info, "vmem_capacity_bytes", cap)) or cap
    except Exception:
        pass
    # ~3/4 of physical VMEM: ~96 MiB on v5e/v6e (128 MiB), ~48 MiB on v7x (64 MiB).
    return int(min(cap * 3 // 4, 100 << 20))


def resblock_forward(x_nchw, params):
    n, cin, h, w = x_nchw.shape
    cout = params['conv_w'].shape[0]
    assert h >= 3 and w >= 3
    hout = (h - 3) // 2 + 1
    wout = (w - 3) // 2 + 1
    hh, wh = hout + 1, wout + 1          # parity grid extents (= ceil of padded dims / 2)
    m = hout * wh                        # kernel's flattened spatial extent
    L = hh * wh + wh                     # flat input length (+ slack for shifted taps)
    eps = 1e-5

    # --- glue: pad H/W to 2*hh x 2*wh, parity-split, flatten spatial ----------
    x = x_nchw
    hp, wp = 2 * hh, 2 * wh
    if (hp, wp) != (h, w):
        x = jnp.pad(x, ((0, 0), (0, 0), (0, hp - h), (0, wp - w)))
    xr = x.reshape(n, cin, hh, 2, wh, 2)
    xr = jnp.transpose(xr, (0, 3, 5, 1, 2, 4))          # (n, 2, 2, cin, hh, wh)
    xflat = xr.reshape(n, 4, cin, hh * wh)
    xflat = jnp.pad(xflat, ((0, 0), (0, 0), (0, 0), (0, L - hh * wh)))

    # --- glue: fold AvgPool + Conv1x1 + BN(eval) into one transposed im2col ----
    # --- weight and concatenate with skip_conv1 -> single stage-1 matmul -------
    scale = params['bn_gamma'] / jnp.sqrt(params['bn_var'] + eps)
    shift = params['bn_beta'] - params['bn_mean'] * scale
    convw = params['conv_w'].reshape(cout, cin)                              # (Cout, Cin)
    w_a = jnp.tile(convw * scale[:, None] / 9.0, (1, 9))                     # (Cout, 9*Cin)
    b_a = params['conv_b'] * scale + shift
    w1 = jnp.transpose(params['skip1_w'], (0, 2, 3, 1)).reshape(cout, 9 * cin)
    w_ab = jnp.concatenate([w_a, w1], axis=0).astype(jnp.bfloat16)           # (2*Cout, 9*Cin)
    b_ab = jnp.concatenate([b_a, params['skip1_b']]).reshape(2 * cout, 1)    # f32
    w2 = jnp.transpose(params['skip2_w'], (0, 2, 3, 1)).reshape(cout, 9 * cout)
    w2 = w2.astype(jnp.bfloat16)                                             # (Cout, 9*Cout)
    b2 = params['skip2_b'].reshape(cout, 1)                                  # f32

    # --- batch tile: amortize per-grid-step overhead at small image sizes ------
    bytes_in = 4 * cin * L * 4
    bytes_out = cout * m * 4
    bytes_tmp = m * (9 * cin * 2 + 9 * cout * 2 + 4 * cout * 4)
    per_img = 2 * (bytes_in + bytes_out) + bytes_tmp
    b_tile = 1
    for cand in range(2, min(n, 8) + 1):
        if n % cand == 0 and cand * per_img <= (8 << 20):
            b_tile = cand

    kernel = functools.partial(resblock_kernel, hout=hout, wh=wh, cin=cin,
                               cout=cout, b_tile=b_tile)
    vmem_limit = _vmem_limit_bytes()

    def call(single_buffer_weights):
        def wspec(shape):
            idx = lambda b: tuple(0 for _ in shape)
            if single_buffer_weights:
                # Grid-invariant weights: no need for a second pipeline buffer.
                return pl.BlockSpec(shape, idx, pipeline_mode=pl.Buffered(1))
            return pl.BlockSpec(shape, idx)

        return pl.pallas_call(
            kernel,
            out_shape=jax.ShapeDtypeStruct((n, cout, m), jnp.float32),
            grid_spec=pltpu.PrefetchScalarGridSpec(
                num_scalar_prefetch=0,
                grid=(n // b_tile,),
                in_specs=[
                    pl.BlockSpec((b_tile, 4, cin, L), lambda b: (b, 0, 0, 0)),
                    wspec((2 * cout, 9 * cin)),
                    wspec((2 * cout, 1)),
                    wspec((cout, 9 * cout)),
                    wspec((cout, 1)),
                ],
                out_specs=pl.BlockSpec((b_tile, cout, m), lambda b: (b, 0, 0)),
            ),
            compiler_params=pltpu.CompilerParams(
                dimension_semantics=("parallel",),      # batch tiles are independent
                vmem_limit_bytes=vmem_limit,
            ),
        )(xflat, w_ab, b_ab, w2, b2)

    try:
        out = call(True)
    except Exception:
        # Older JAX without BlockSpec.pipeline_mode / pl.Buffered.
        out = call(False)

    # Drop the per-row spare column; output is already channel-major NCHW.
    return out.reshape(n, cout, hout, wh)[:, :, :, :wout]


def ref_forward(x, params):
    """Pure-JAX (XLA conv) reference for correctness checking."""
    dn = ('NCHW', 'OIHW', 'NCHW')
    eps = 1e-5
    pooled = lax.reduce_window(x, 0.0, lax.add, (1, 1, 3, 3), (1, 1, 2, 2), 'VALID') / 9.0
    a = lax.conv_general_dilated(pooled, params['conv_w'], (1, 1), 'VALID',
                                 dimension_numbers=dn) + params['conv_b'][None, :, None, None]
    scale = params['bn_gamma'] / jnp.sqrt(params['bn_var'] + eps)
    shift = params['bn_beta'] - params['bn_mean'] * scale
    a = a * scale[None, :, None, None] + shift[None, :, None, None]
    y1 = lax.conv_general_dilated(x, params['skip1_w'], (2, 2), 'VALID',
                                  dimension_numbers=dn) + params['skip1_b'][None, :, None, None]
    y2 = lax.conv_general_dilated(y1, params['skip2_w'], (1, 1), ((1, 1), (1, 1)),
                                  dimension_numbers=dn) + params['skip2_b'][None, :, None, None]
    return a + y2


def init_params(key, cin, cout):
    ks = jax.random.split(key, 8)
    return {
        'conv_w':  0.1 * jax.random.normal(ks[0], (cout, cin, 1, 1), jnp.float32),
        'conv_b':  0.1 * jax.random.normal(ks[1], (cout,), jnp.float32),
        'bn_gamma': 1.0 + 0.1 * jax.random.normal(ks[2], (cout,), jnp.float32),
        'bn_beta': 0.1 * jax.random.normal(ks[3], (cout,), jnp.float32),
        'bn_mean': jnp.zeros((cout,), jnp.float32),
        'bn_var':  jnp.ones((cout,), jnp.float32),
        'skip1_w': 0.1 * jax.random.normal(ks[4], (cout, cin, 3, 3), jnp.float32),
        'skip1_b': 0.1 * jax.random.normal(ks[5], (cout,), jnp.float32),
        'skip2_w': 0.1 * jax.random.normal(ks[6], (cout, cout, 3, 3), jnp.float32),
        'skip2_b': 0.1 * jax.random.normal(ks[7], (cout,), jnp.float32),
    }


if __name__ == "__main__":
    key = jax.random.PRNGKey(0)
    kx, kp = jax.random.split(key)
    N, Cin, Cout, H, W = 2, 4, 8, 16, 16
    x = jax.random.normal(kx, (N, Cin, H, W), jnp.float32)
    params = init_params(kp, Cin, Cout)

    out = jax.block_until_ready(resblock_forward(x, params))
    ref = jax.block_until_ready(ref_forward(x, params))

    assert out.shape == ref.shape, (out.shape, ref.shape)
    # bf16 MXU operands with f32 accumulation -> tolerance relaxed from 1e-4.
    assert np.allclose(np.asarray(out), np.asarray(ref), rtol=3e-2, atol=3e-2), \
        float(np.max(np.abs(np.asarray(out) - np.asarray(ref))))

    print("KERNEL_OK")
</pallas_src>

<mosaic_0001>
module attributes {stable_mosaic.version = 11 : i64} {
  func.func @resblock_kernel(%arg0: i32, %arg1: memref<2x4x4x72xf32, #tpu.memory_space<vmem>>, %arg2: memref<16x36xbf16, #tpu.memory_space<vmem>>, %arg3: memref<16x1xf32, #tpu.memory_space<vmem>>, %arg4: memref<8x72xbf16, #tpu.memory_space<vmem>>, %arg5: memref<8x1xf32, #tpu.memory_space<vmem>>, %arg6: memref<2x8x56xf32, #tpu.memory_space<vmem>>) attributes {dimension_semantics = [#tpu.dimension_semantics<parallel>], iteration_bounds = array<i64: 1>, scalar_prefetch = 0 : i64, scratch_operands = 0 : i64, tpu.core_type = #tpu.core_type<tc>, window_params = [{transform_indices = @transform_0, window_bounds = array<i64: 2, 4, 4, 72>}, {pipeline_mode = #tpu.pipeline_mode<synchronous>, transform_indices = @transform_1, window_bounds = array<i64: 16, 36>}, {pipeline_mode = #tpu.pipeline_mode<synchronous>, transform_indices = @transform_2, window_bounds = array<i64: 16, 1>}, {pipeline_mode = #tpu.pipeline_mode<synchronous>, transform_indices = @transform_3, window_bounds = array<i64: 8, 72>}, {pipeline_mode = #tpu.pipeline_mode<synchronous>, transform_indices = @transform_4, window_bounds = array<i64: 8, 1>}, {transform_indices = @transform_5, window_bounds = array<i64: 2, 8, 56>}]} {
    %0 = tpu.iota {dimensions = array<i32: 1>} : vector<1x56xi32>
    %c8_i32 = arith.constant 8 : i32
    %c0_i32 = arith.constant 0 : i32
    %1 = arith.cmpi eq, %c8_i32, %c0_i32 : i32
    %c1_i32 = arith.constant 1 : i32
    %2 = arith.select %1, %c1_i32, %c8_i32 : i32
    %3 = vector.broadcast %2 : i32 to vector<1x56xi32>
    %4 = arith.remsi %0, %3 : vector<1x56xi32>
    %c0_i32_0 = arith.constant 0 : i32
    %5 = vector.broadcast %c0_i32_0 : i32 to vector<1x56xi32>
    %6 = arith.cmpi ne, %4, %5 : vector<1x56xi32>
    %c0_i32_1 = arith.constant 0 : i32
    %7 = vector.broadcast %c0_i32_1 : i32 to vector<1x56xi32>
    %8 = arith.cmpi slt, %4, %7 : vector<1x56xi32>
    %c0_i32_2 = arith.constant 0 : i32
    %9 = arith.cmpi slt, %2, %c0_i32_2 : i32
    %10 = vector.broadcast %9 : i1 to vector<1x56xi1>
    %11 = vector.broadcast %10 : vector<1x56xi1> to vector<1x56xi1>
    %12 = arith.xori %8, %11 : vector<1x56xi1>
    %13 = arith.andi %12, %6 : vector<1x56xi1>
    %14 = vector.broadcast %2 : i32 to vector<1x56xi32>
    %15 = arith.addi %4, %14 : vector<1x56xi32>
    %16 = arith.select %13, %15, %4 : vector<1x56xi1>, vector<1x56xi32>
    %c7_i32 = arith.constant 7 : i32
    %17 = vector.broadcast %c7_i32 : i32 to vector<1x56xi32>
    %18 = arith.cmpi slt, %16, %17 : vector<1x56xi32>
    %c0 = arith.constant 0 : index
    %c0_3 = arith.constant 0 : index
    %19 = vector.load %arg2[%c0, %c0_3] : memref<16x36xbf16, #tpu.memory_space<vmem>>, vector<16x36xbf16>
    %c0_4 = arith.constant 0 : index
    %c0_5 = arith.constant 0 : index
    %20 = vector.load %arg3[%c0_4, %c0_5] : memref<16x1xf32, #tpu.memory_space<vmem>>, vector<16x1xf32>
    %c0_6 = arith.constant 0 : index
    %c0_7 = arith.constant 0 : index
    %21 = vector.load %arg4[%c0_6, %c0_7] : memref<8x72xbf16, #tpu.memory_space<vmem>>, vector<8x72xbf16>
    %c0_8 = arith.constant 0 : index
    %c0_9 = arith.constant 0 : index
    %22 = vector.load %arg5[%c0_8, %c0_9] : memref<8x1xf32, #tpu.memory_space<vmem>>, vector<8x1xf32>
    %c0_10 = arith.constant 0 : index
    %c0_11 = arith.constant 0 : index
    %c0_12 = arith.constant 0 : index
    %c0_13 = arith.constant 0 : index
    %23 = vector.load %arg1[%c0_10, %c0_11, %c0_12, %c0_13] : memref<2x4x4x72xf32, #tpu.memory_space<vmem>>, vector<1x1x4x56xf32>
    %24 = vector.shape_cast %23 : vector<1x1x4x56xf32> to vector<4x56xf32>
    %c0_14 = arith.constant 0 : index
    %c1 = arith.constant 1 : index
    %c0_15 = arith.constant 0 : index
    %c0_16 = arith.constant 0 : index
    %25 = vector.load %arg1[%c0_14, %c1, %c0_15, %c0_16] : memref<2x4x4x72xf32, #tpu.memory_space<vmem>>, vector<1x1x4x56xf32>
    %26 = vector.shape_cast %25 : vector<1x1x4x56xf32> to vector<4x56xf32>
    %c0_17 = arith.constant 0 : index
    %c0_18 = arith.constant 0 : index
    %c0_19 = arith.constant 0 : index
    %c1_20 = arith.constant 1 : index
    %27 = vector.load %arg1[%c0_17, %c0_18, %c0_19, %c1_20] : memref<2x4x4x72xf32, #tpu.memory_space<vmem>>, vector<1x1x4x56xf32>
    %28 = vector.shape_cast %27 : vector<1x1x4x56xf32> to vector<4x56xf32>
    %c0_21 = arith.constant 0 : index
    %c2 = arith.constant 2 : index
    %c0_22 = arith.constant 0 : index
    %c0_23 = arith.constant 0 : index
    %29 = vector.load %arg1[%c0_21, %c2, %c0_22, %c0_23] : memref<2x4x4x72xf32, #tpu.memory_space<vmem>>, vector<1x1x4x56xf32>
    %30 = vector.shape_cast %29 : vector<1x1x4x56xf32> to vector<4x56xf32>
    %c0_24 = arith.constant 0 : index
    %c3 = arith.constant 3 : index
    %c0_25 = arith.constant 0 : index
    %c0_26 = arith.constant 0 : index
    %31 = vector.load %arg1[%c0_24, %c3, %c0_25, %c0_26] : memref<2x4x4x72xf32, #tpu.memory_space<vmem>>, vector<1x1x4x56xf32>
    %32 = vector.shape_cast %31 : vector<1x1x4x56xf32> to vector<4x56xf32>
    %c0_27 = arith.constant 0 : index
    %c2_28 = arith.constant 2 : index
    %c0_29 = arith.constant 0 : index
    %c1_30 = arith.constant 1 : index
    %33 = vector.load %arg1[%c0_27, %c2_28, %c0_29, %c1_30] : memref<2x4x4x72xf32, #tpu.memory_space<vmem>>, vector<1x1x4x56xf32>
    %34 = vector.shape_cast %33 : vector<1x1x4x56xf32> to vector<4x56xf32>
    %c0_31 = arith.constant 0 : index
    %c0_32 = arith.constant 0 : index
    %c0_33 = arith.constant 0 : index
    %c8 = arith.constant 8 : index
    %35 = vector.load %arg1[%c0_31, %c0_32, %c0_33, %c8] : memref<2x4x4x72xf32, #tpu.memory_space<vmem>>, vector<1x1x4x56xf32>
    %36 = vector.shape_cast %35 : vector<1x1x4x56xf32> to vector<4x56xf32>
    %c0_34 = arith.constant 0 : index
    %c1_35 = arith.constant 1 : index
    %c0_36 = arith.constant 0 : index
    %c8_37 = arith.constant 8 : index
    %37 = vector.load %arg1[%c0_34, %c1_35, %c0_36, %c8_37] : memref<2x4x4x72xf32, #tpu.memory_space<vmem>>, vector<1x1x4x56xf32>
    %38 = vector.shape_cast %37 : vector<1x1x4x56xf32> to vector<4x56xf32>
    %c0_38 = arith.constant 0 : index
    %c0_39 = arith.constant 0 : index
    %c0_40 = arith.constant 0 : index
    %c9 = arith.constant 9 : index
    %39 = vector.load %arg1[%c0_38, %c0_39, %c0_40, %c9] : memref<2x4x4x72xf32, #tpu.memory_space<vmem>>, vector<1x1x4x56xf32>
    %40 = vector.shape_cast %39 : vector<1x1x4x56xf32> to vector<4x56xf32>
    %41 = tpu.concatenate %24, %26, %28, %30, %32, %34, %36, %38, %40 in 0 : vector<4x56xf32>, vector<4x56xf32>, vector<4x56xf32>, vector<4x56xf32>, vector<4x56xf32>, vector<4x56xf32>, vector<4x56xf32>, vector<4x56xf32>, vector<4x56xf32> -> vector<36x56xf32>
    %42 = arith.truncf %41 : vector<36x56xf32> to vector<36x56xbf16>
    %cst = arith.constant dense<0.000000e+00> : vector<16x56xf32>
    %43 = tpu.matmul %19, %42, %cst {dimension_numbers = #tpu.dot_dimension_numbers<[1], [0], [0], [1], [0, 0, 1, 1], [], []>} : vector<16x36xbf16>, vector<36x56xbf16>, vector<16x56xf32> -> vector<16x56xf32>
    %44 = vector.broadcast %20 : vector<16x1xf32> to vector<16x56xf32>
    %45 = arith.addf %43, %44 : vector<16x56xf32>
    %46 = vector.extract_strided_slice %45 {offsets = [0, 0], sizes = [8, 56], strides = [1, 1]} : vector<16x56xf32> to vector<8x56xf32>
    %47 = vector.extract_strided_slice %45 {offsets = [8, 0], sizes = [8, 56], strides = [1, 1]} : vector<16x56xf32> to vector<8x56xf32>
    %cst_41 = arith.constant 0.000000e+00 : f32
    %48 = vector.shape_cast %18 : vector<1x56xi1> to vector<1x56xi1>
    %49 = vector.broadcast %48 : vector<1x56xi1> to vector<8x56xi1>
    %50 = vector.broadcast %cst_41 : f32 to vector<8x56xf32>
    %51 = arith.select %49, %47, %50 : vector<8x56xi1>, vector<8x56xf32>
    %cst_42 = arith.constant 0.000000e+00 : f32
    %52 = vector.broadcast %cst_42 : f32 to vector<8x9xf32>
    %53 = tpu.concatenate %52, %51, %52 in 1 : vector<8x9xf32>, vector<8x56xf32>, vector<8x9xf32> -> vector<8x74xf32>
    %54 = vector.extract_strided_slice %53 {offsets = [0, 0], sizes = [8, 56], strides = [1, 1]} : vector<8x74xf32> to vector<8x56xf32>
    %55 = vector.extract_strided_slice %53 {offsets = [0, 1], sizes = [8, 56], strides = [1, 1]} : vector<8x74xf32> to vector<8x56xf32>
    %56 = vector.extract_strided_slice %53 {offsets = [0, 2], sizes = [8, 56], strides = [1, 1]} : vector<8x74xf32> to vector<8x56xf32>
    %57 = vector.extract_strided_slice %53 {offsets = [0, 8], sizes = [8, 56], strides = [1, 1]} : vector<8x74xf32> to vector<8x56xf32>
    %58 = vector.extract_strided_slice %53 {offsets = [0, 9], sizes = [8, 56], strides = [1, 1]} : vector<8x74xf32> to vector<8x56xf32>
    %59 = vector.extract_strided_slice %53 {offsets = [0, 10], sizes = [8, 56], strides = [1, 1]} : vector<8x74xf32> to vector<8x56xf32>
    %60 = vector.extract_strided_slice %53 {offsets = [0, 16], sizes = [8, 56], strides = [1, 1]} : vector<8x74xf32> to vector<8x56xf32>
    %61 = vector.extract_strided_slice %53 {offsets = [0, 17], sizes = [8, 56], strides = [1, 1]} : vector<8x74xf32> to vector<8x56xf32>
    %62 = vector.extract_strided_slice %53 {offsets = [0, 18], sizes = [8, 56], strides = [1, 1]} : vector<8x74xf32> to vector<8x56xf32>
    %63 = tpu.concatenate %54, %55, %56, %57, %58, %59, %60, %61, %62 in 0 : vector<8x56xf32>, vector<8x56xf32>, vector<8x56xf32>, vector<8x56xf32>, vector<8x56xf32>, vector<8x56xf32>, vector<8x56xf32>, vector<8x56xf32>, vector<8x56xf32> -> vector<72x56xf32>
    %64 = arith.truncf %63 : vector<72x56xf32> to vector<72x56xbf16>
    %cst_43 = arith.constant dense<0.000000e+00> : vector<8x56xf32>
    %65 = tpu.matmul %21, %64, %cst_43 {dimension_numbers = #tpu.dot_dimension_numbers<[1], [0], [0], [1], [0, 0, 1, 1], [], []>} : vector<8x72xbf16>, vector<72x56xbf16>, vector<8x56xf32> -> vector<8x56xf32>
    %66 = vector.broadcast %22 : vector<8x1xf32> to vector<8x56xf32>
    %67 = arith.addf %65, %66 : vector<8x56xf32>
    %68 = arith.addf %46, %67 : vector<8x56xf32>
    %c0_44 = arith.constant 0 : index
    %c0_45 = arith.constant 0 : index
    %c0_46 = arith.constant 0 : index
    %69 = vector.load %arg6[%c0_44, %c0_45, %c0_46] : memref<2x8x56xf32, #tpu.memory_space<vmem>>, vector<1x8x56xf32>
    %70 = vector.shape_cast %69 : vector<1x8x56xf32> to vector<8x56xf32>
    %71 = vector.shape_cast %68 : vector<8x56xf32> to vector<1x8x56xf32>
    tpu.vector_store %arg6[%c0_44, %c0_45, %c0_46], %71 {strides = array<i32>} : memref<2x8x56xf32, #tpu.memory_space<vmem>>, vector<1x8x56xf32>,
    %c1_47 = arith.constant 1 : index
    %c0_48 = arith.constant 0 : index
    %c0_49 = arith.constant 0 : index
    %c0_50 = arith.constant 0 : index
    %72 = vector.load %arg1[%c1_47, %c0_48, %c0_49, %c0_50] : memref<2x4x4x72xf32, #tpu.memory_space<vmem>>, vector<1x1x4x56xf32>
    %73 = vector.shape_cast %72 : vector<1x1x4x56xf32> to vector<4x56xf32>
    %c1_51 = arith.constant 1 : index
    %c1_52 = arith.constant 1 : index
    %c0_53 = arith.constant 0 : index
    %c0_54 = arith.constant 0 : index
    %74 = vector.load %arg1[%c1_51, %c1_52, %c0_53, %c0_54] : memref<2x4x4x72xf32, #tpu.memory_space<vmem>>, vector<1x1x4x56xf32>
    %75 = vector.shape_cast %74 : vector<1x1x4x56xf32> to vector<4x56xf32>
    %c1_55 = arith.constant 1 : index
    %c0_56 = arith.constant 0 : index
    %c0_57 = arith.constant 0 : index
    %c1_58 = arith.constant 1 : index
    %76 = vector.load %arg1[%c1_55, %c0_56, %c0_57, %c1_58] : memref<2x4x4x72xf32, #tpu.memory_space<vmem>>, vector<1x1x4x56xf32>
    %77 = vector.shape_cast %76 : vector<1x1x4x56xf32> to vector<4x56xf32>
    %c1_59 = arith.constant 1 : index
    %c2_60 = arith.constant 2 : index
    %c0_61 = arith.constant 0 : index
    %c0_62 = arith.constant 0 : index
    %78 = vector.load %arg1[%c1_59, %c2_60, %c0_61, %c0_62] : memref<2x4x4x72xf32, #tpu.memory_space<vmem>>, vector<1x1x4x56xf32>
    %79 = vector.shape_cast %78 : vector<1x1x4x56xf32> to vector<4x56xf32>
    %c1_63 = arith.constant 1 : index
    %c3_64 = arith.constant 3 : index
    %c0_65 = arith.constant 0 : index
    %c0_66 = arith.constant 0 : index
    %80 = vector.load %arg1[%c1_63, %c3_64, %c0_65, %c0_66] : memref<2x4x4x72xf32, #tpu.memory_space<vmem>>, vector<1x1x4x56xf32>
    %81 = vector.shape_cast %80 : vector<1x1x4x56xf32> to vector<4x56xf32>
    %c1_67 = arith.constant 1 : index
    %c2_68 = arith.constant 2 : index
    %c0_69 = arith.constant 0 : index
    %c1_70 = arith.constant 1 : index
    %82 = vector.load %arg1[%c1_67, %c2_68, %c0_69, %c1_70] : memref<2x4x4x72xf32, #tpu.memory_space<vmem>>, vector<1x1x4x56xf32>
    %83 = vector.shape_cast %82 : vector<1x1x4x56xf32> to vector<4x56xf32>
    %c1_71 = arith.constant 1 : index
    %c0_72 = arith.constant 0 : index
    %c0_73 = arith.constant 0 : index
    %c8_74 = arith.constant 8 : index
    %84 = vector.load %arg1[%c1_71, %c0_72, %c0_73, %c8_74] : memref<2x4x4x72xf32, #tpu.memory_space<vmem>>, vector<1x1x4x56xf32>
    %85 = vector.shape_cast %84 : vector<1x1x4x56xf32> to vector<4x56xf32>
    %c1_75 = arith.constant 1 : index
    %c1_76 = arith.constant 1 : index
    %c0_77 = arith.constant 0 : index
    %c8_78 = arith.constant 8 : index
    %86 = vector.load %arg1[%c1_75, %c1_76, %c0_77, %c8_78] : memref<2x4x4x72xf32, #tpu.memory_space<vmem>>, vector<1x1x4x56xf32>
    %87 = vector.shape_cast %86 : vector<1x1x4x56xf32> to vector<4x56xf32>
    %c1_79 = arith.constant 1 : index
    %c0_80 = arith.constant 0 : index
    %c0_81 = arith.constant 0 : index
    %c9_82 = arith.constant 9 : index
    %88 = vector.load %arg1[%c1_79, %c0_80, %c0_81, %c9_82] : memref<2x4x4x72xf32, #tpu.memory_space<vmem>>, vector<1x1x4x56xf32>
    %89 = vector.shape_cast %88 : vector<1x1x4x56xf32> to vector<4x56xf32>
    %90 = tpu.concatenate %73, %75, %77, %79, %81, %83, %85, %87, %89 in 0 : vector<4x56xf32>, vector<4x56xf32>, vector<4x56xf32>, vector<4x56xf32>, vector<4x56xf32>, vector<4x56xf32>, vector<4x56xf32>, vector<4x56xf32>, vector<4x56xf32> -> vector<36x56xf32>
    %91 = arith.truncf %90 : vector<36x56xf32> to vector<36x56xbf16>
    %cst_83 = arith.constant dense<0.000000e+00> : vector<16x56xf32>
    %92 = tpu.matmul %19, %91, %cst_83 {dimension_numbers = #tpu.dot_dimension_numbers<[1], [0], [0], [1], [0, 0, 1, 1], [], []>} : vector<16x36xbf16>, vector<36x56xbf16>, vector<16x56xf32> -> vector<16x56xf32>
    %93 = vector.broadcast %20 : vector<16x1xf32> to vector<16x56xf32>
    %94 = arith.addf %92, %93 : vector<16x56xf32>
    %95 = vector.extract_strided_slice %94 {offsets = [0, 0], sizes = [8, 56], strides = [1, 1]} : vector<16x56xf32> to vector<8x56xf32>
    %96 = vector.extract_strided_slice %94 {offsets = [8, 0], sizes = [8, 56], strides = [1, 1]} : vector<16x56xf32> to vector<8x56xf32>
    %cst_84 = arith.constant 0.000000e+00 : f32
    %97 = vector.shape_cast %18 : vector<1x56xi1> to vector<1x56xi1>
    %98 = vector.broadcast %97 : vector<1x56xi1> to vector<8x56xi1>
    %99 = vector.broadcast %cst_84 : f32 to vector<8x56xf32>
    %100 = arith.select %98, %96, %99 : vector<8x56xi1>, vector<8x56xf32>
    %cst_85 = arith.constant 0.000000e+00 : f32
    %101 = vector.broadcast %cst_85 : f32 to vector<8x9xf32>
    %102 = tpu.concatenate %101, %100, %101 in 1 : vector<8x9xf32>, vector<8x56xf32>, vector<8x9xf32> -> vector<8x74xf32>
    %103 = vector.extract_strided_slice %102 {offsets = [0, 0], sizes = [8, 56], strides = [1, 1]} : vector<8x74xf32> to vector<8x56xf32>
    %104 = vector.extract_strided_slice %102 {offsets = [0, 1], sizes = [8, 56], strides = [1, 1]} : vector<8x74xf32> to vector<8x56xf32>
    %105 = vector.extract_strided_slice %102 {offsets = [0, 2], sizes = [8, 56], strides = [1, 1]} : vector<8x74xf32> to vector<8x56xf32>
    %106 = vector.extract_strided_slice %102 {offsets = [0, 8], sizes = [8, 56], strides = [1, 1]} : vector<8x74xf32> to vector<8x56xf32>
    %107 = vector.extract_strided_slice %102 {offsets = [0, 9], sizes = [8, 56], strides = [1, 1]} : vector<8x74xf32> to vector<8x56xf32>
    %108 = vector.extract_strided_slice %102 {offsets = [0, 10], sizes = [8, 56], strides = [1, 1]} : vector<8x74xf32> to vector<8x56xf32>
    %109 = vector.extract_strided_slice %102 {offsets = [0, 16], sizes = [8, 56], strides = [1, 1]} : vector<8x74xf32> to vector<8x56xf32>
    %110 = vector.extract_strided_slice %102 {offsets = [0, 17], sizes = [8, 56], strides = [1, 1]} : vector<8x74xf32> to vector<8x56xf32>
    %111 = vector.extract_strided_slice %102 {offsets = [0, 18], sizes = [8, 56], strides = [1, 1]} : vector<8x74xf32> to vector<8x56xf32>
    %112 = tpu.concatenate %103, %104, %105, %106, %107, %108, %109, %110, %111 in 0 : vector<8x56xf32>, vector<8x56xf32>, vector<8x56xf32>, vector<8x56xf32>, vector<8x56xf32>, vector<8x56xf32>, vector<8x56xf32>, vector<8x56xf32>, vector<8x56xf32> -> vector<72x56xf32>
    %113 = arith.truncf %112 : vector<72x56xf32> to vector<72x56xbf16>
    %cst_86 = arith.constant dense<0.000000e+00> : vector<8x56xf32>
    %114 = tpu.matmul %21, %113, %cst_86 {dimension_numbers = #tpu.dot_dimension_numbers<[1], [0], [0], [1], [0, 0, 1, 1], [], []>} : vector<8x72xbf16>, vector<72x56xbf16>, vector<8x56xf32> -> vector<8x56xf32>
    %115 = vector.broadcast %22 : vector<8x1xf32> to vector<8x56xf32>
    %116 = arith.addf %114, %115 : vector<8x56xf32>
    %117 = arith.addf %95, %116 : vector<8x56xf32>
    %c1_87 = arith.constant 1 : index
    %c0_88 = arith.constant 0 : index
    %c0_89 = arith.constant 0 : index
    %118 = vector.load %arg6[%c1_87, %c0_88, %c0_89] : memref<2x8x56xf32, #tpu.memory_space<vmem>>, vector<1x8x56xf32>
    %119 = vector.shape_cast %118 : vector<1x8x56xf32> to vector<8x56xf32>
    %120 = vector.shape_cast %117 : vector<8x56xf32> to vector<1x8x56xf32>
    tpu.vector_store %arg6[%c1_87, %c0_88, %c0_89], %120 {strides = array<i32>} : memref<2x8x56xf32, #tpu.memory_space<vmem>>, vector<1x8x56xf32>,
    return
  }
  func.func @transform_0(%arg0: i32) -> (i32, i32, i32, i32) {
    %c0_i32 = arith.constant 0 : i32
    %c0_i32_0 = arith.constant 0 : i32
    %c0_i32_1 = arith.constant 0 : i32
    %c0_i32_2 = arith.constant 0 : i32
    return %arg0, %c0_i32, %c0_i32_0, %c0_i32_1 : i32, i32, i32, i32
  }
  func.func @transform_1(%arg0: i32) -> (i32, i32) {
    %c0_i32 = arith.constant 0 : i32
    %c0_i32_0 = arith.constant 0 : i32
    %c0_i32_1 = arith.constant 0 : i32
    return %c0_i32, %c0_i32_0 : i32, i32
  }
  func.func @transform_2(%arg0: i32) -> (i32, i32) {
    %c0_i32 = arith.constant 0 : i32
    %c0_i32_0 = arith.constant 0 : i32
    %c0_i32_1 = arith.constant 0 : i32
    return %c0_i32, %c0_i32_0 : i32, i32
  }
  func.func @transform_3(%arg0: i32) -> (i32, i32) {
    %c0_i32 = arith.constant 0 : i32
    %c0_i32_0 = arith.constant 0 : i32
    %c0_i32_1 = arith.constant 0 : i32
    return %c0_i32, %c0_i32_0 : i32, i32
  }
  func.func @transform_4(%arg0: i32) -> (i32, i32) {
    %c0_i32 = arith.constant 0 : i32
    %c0_i32_0 = arith.constant 0 : i32
    %c0_i32_1 = arith.constant 0 : i32
    return %c0_i32, %c0_i32_0 : i32, i32
  }
  func.func @transform_5(%arg0: i32) -> (i32, i32, i32) {
    %c0_i32 = arith.constant 0 : i32
    %c0_i32_0 = arith.constant 0 : i32
    %c0_i32_1 = arith.constant 0 : i32
    return %arg0, %c0_i32, %c0_i32_0 : i32, i32, i32
  }
}

module attributes {stable_mosaic.version = 11 : i64} {
  func.func @resblock_kernel(%arg0: i32, %arg1: memref<2x4x4x72xf32, #tpu.memory_space<vmem>>, %arg2: memref<16x36xbf16, #tpu.memory_space<vmem>>, %arg3: memref<16x1xf32, #tpu.memory_space<vmem>>, %arg4: memref<8x72xbf16, #tpu.memory_space<vmem>>, %arg5: memref<8x1xf32, #tpu.memory_space<vmem>>, %arg6: memref<2x8x56xf32, #tpu.memory_space<vmem>>) attributes {dimension_semantics = [#tpu.dimension_semantics<parallel>], iteration_bounds = array<i64: 1>, scalar_prefetch = 0 : i64, scratch_operands = 0 : i64, tpu.core_type = #tpu.core_type<tc>, window_params = [{transform_indices = @transform_0, window_bounds = array<i64: 2, 4, 4, 72>}, {pipeline_mode = #tpu.pipeline_mode<synchronous>, transform_indices = @transform_1, window_bounds = array<i64: 16, 36>}, {pipeline_mode = #tpu.pipeline_mode<synchronous>, transform_indices = @transform_2, window_bounds = array<i64: 16, 1>}, {pipeline_mode = #tpu.pipeline_mode<synchronous>, transform_indices = @transform_3, window_bounds = array<i64: 8, 72>}, {pipeline_mode = #tpu.pipeline_mode<synchronous>, transform_indices = @transform_4, window_bounds = array<i64: 8, 1>}, {transform_indices = @transform_5, window_bounds = array<i64: 2, 8, 56>}]} {
    %0 = tpu.iota {dimensions = array<i32: 1>} : vector<1x56xi32>
    %c8_i32 = arith.constant 8 : i32
    %c0_i32 = arith.constant 0 : i32
    %1 = arith.cmpi eq, %c8_i32, %c0_i32 : i32
    %c1_i32 = arith.constant 1 : i32
    %2 = arith.select %1, %c1_i32, %c8_i32 : i32
    %3 = vector.broadcast %2 : i32 to vector<1x56xi32>
    %4 = arith.remsi %0, %3 : vector<1x56xi32>
    %c0_i32_0 = arith.constant 0 : i32
    %5 = vector.broadcast %c0_i32_0 : i32 to vector<1x56xi32>
    %6 = arith.cmpi ne, %4, %5 : vector<1x56xi32>
    %c0_i32_1 = arith.constant 0 : i32
    %7 = vector.broadcast %c0_i32_1 : i32 to vector<1x56xi32>
    %8 = arith.cmpi slt, %4, %7 : vector<1x56xi32>
    %c0_i32_2 = arith.constant 0 : i32
    %9 = arith.cmpi slt, %2, %c0_i32_2 : i32
    %10 = vector.broadcast %9 : i1 to vector<1x56xi1>
    %11 = vector.broadcast %10 : vector<1x56xi1> to vector<1x56xi1>
    %12 = arith.xori %8, %11 : vector<1x56xi1>
    %13 = arith.andi %12, %6 : vector<1x56xi1>
    %14 = vector.broadcast %2 : i32 to vector<1x56xi32>
    %15 = arith.addi %4, %14 : vector<1x56xi32>
    %16 = arith.select %13, %15, %4 : vector<1x56xi1>, vector<1x56xi32>
    %c7_i32 = arith.constant 7 : i32
    %17 = vector.broadcast %c7_i32 : i32 to vector<1x56xi32>
    %18 = arith.cmpi slt, %16, %17 : vector<1x56xi32>
    %c0 = arith.constant 0 : index
    %c0_3 = arith.constant 0 : index
    %19 = vector.load %arg2[%c0, %c0_3] : memref<16x36xbf16, #tpu.memory_space<vmem>>, vector<16x36xbf16>
    %c0_4 = arith.constant 0 : index
    %c0_5 = arith.constant 0 : index
    %20 = vector.load %arg3[%c0_4, %c0_5] : memref<16x1xf32, #tpu.memory_space<vmem>>, vector<16x1xf32>
    %c0_6 = arith.constant 0 : index
    %c0_7 = arith.constant 0 : index
    %21 = vector.load %arg4[%c0_6, %c0_7] : memref<8x72xbf16, #tpu.memory_space<vmem>>, vector<8x72xbf16>
    %c0_8 = arith.constant 0 : index
    %c0_9 = arith.constant 0 : index
    %22 = vector.load %arg5[%c0_8, %c0_9] : memref<8x1xf32, #tpu.memory_space<vmem>>, vector<8x1xf32>
    %c0_10 = arith.constant 0 : index
    %c0_11 = arith.constant 0 : index
    %c0_12 = arith.constant 0 : index
    %c0_13 = arith.constant 0 : index
    %23 = vector.load %arg1[%c0_10, %c0_11, %c0_12, %c0_13] : memref<2x4x4x72xf32, #tpu.memory_space<vmem>>, vector<1x1x4x56xf32>
    %24 = vector.shape_cast %23 : vector<1x1x4x56xf32> to vector<4x56xf32>
    %c0_14 = arith.constant 0 : index
    %c1 = arith.constant 1 : index
    %c0_15 = arith.constant 0 : index
    %c0_16 = arith.constant 0 : index
    %25 = vector.load %arg1[%c0_14, %c1, %c0_15, %c0_16] : memref<2x4x4x72xf32, #tpu.memory_space<vmem>>, vector<1x1x4x56xf32>
    %26 = vector.shape_cast %25 : vector<1x1x4x56xf32> to vector<4x56xf32>
    %c0_17 = arith.constant 0 : index
    %c0_18 = arith.constant 0 : index
    %c0_19 = arith.constant 0 : index
    %c1_20 = arith.constant 1 : index
    %27 = vector.load %arg1[%c0_17, %c0_18, %c0_19, %c1_20] : memref<2x4x4x72xf32, #tpu.memory_space<vmem>>, vector<1x1x4x56xf32>
    %28 = vector.shape_cast %27 : vector<1x1x4x56xf32> to vector<4x56xf32>
    %c0_21 = arith.constant 0 : index
    %c2 = arith.constant 2 : index
    %c0_22 = arith.constant 0 : index
    %c0_23 = arith.constant 0 : index
    %29 = vector.load %arg1[%c0_21, %c2, %c0_22, %c0_23] : memref<2x4x4x72xf32, #tpu.memory_space<vmem>>, vector<1x1x4x56xf32>
    %30 = vector.shape_cast %29 : vector<1x1x4x56xf32> to vector<4x56xf32>
    %c0_24 = arith.constant 0 : index
    %c3 = arith.constant 3 : index
    %c0_25 = arith.constant 0 : index
    %c0_26 = arith.constant 0 : index
    %31 = vector.load %arg1[%c0_24, %c3, %c0_25, %c0_26] : memref<2x4x4x72xf32, #tpu.memory_space<vmem>>, vector<1x1x4x56xf32>
    %32 = vector.shape_cast %31 : vector<1x1x4x56xf32> to vector<4x56xf32>
    %c0_27 = arith.constant 0 : index
    %c2_28 = arith.constant 2 : index
    %c0_29 = arith.constant 0 : index
    %c1_30 = arith.constant 1 : index
    %33 = vector.load %arg1[%c0_27, %c2_28, %c0_29, %c1_30] : memref<2x4x4x72xf32, #tpu.memory_space<vmem>>, vector<1x1x4x56xf32>
    %34 = vector.shape_cast %33 : vector<1x1x4x56xf32> to vector<4x56xf32>
    %c0_31 = arith.constant 0 : index
    %c0_32 = arith.constant 0 : index
    %c0_33 = arith.constant 0 : index
    %c8 = arith.constant 8 : index
    %35 = vector.load %arg1[%c0_31, %c0_32, %c0_33, %c8] : memref<2x4x4x72xf32, #tpu.memory_space<vmem>>, vector<1x1x4x56xf32>
    %36 = vector.shape_cast %35 : vector<1x1x4x56xf32> to vector<4x56xf32>
    %c0_34 = arith.constant 0 : index
    %c1_35 = arith.constant 1 : index
    %c0_36 = arith.constant 0 : index
    %c8_37 = arith.constant 8 : index
    %37 = vector.load %arg1[%c0_34, %c1_35, %c0_36, %c8_37] : memref<2x4x4x72xf32, #tpu.memory_space<vmem>>, vector<1x1x4x56xf32>
    %38 = vector.shape_cast %37 : vector<1x1x4x56xf32> to vector<4x56xf32>
    %c0_38 = arith.constant 0 : index
    %c0_39 = arith.constant 0 : index
    %c0_40 = arith.constant 0 : index
    %c9 = arith.constant 9 : index
    %39 = vector.load %arg1[%c0_38, %c0_39, %c0_40, %c9] : memref<2x4x4x72xf32, #tpu.memory_space<vmem>>, vector<1x1x4x56xf32>
    %40 = vector.shape_cast %39 : vector<1x1x4x56xf32> to vector<4x56xf32>
    %41 = tpu.concatenate %24, %26, %28, %30, %32, %34, %36, %38, %40 in 0 : vector<4x56xf32>, vector<4x56xf32>, vector<4x56xf32>, vector<4x56xf32>, vector<4x56xf32>, vector<4x56xf32>, vector<4x56xf32>, vector<4x56xf32>, vector<4x56xf32> -> vector<36x56xf32>
    %42 = arith.truncf %41 : vector<36x56xf32> to vector<36x56xbf16>
    %cst = arith.constant dense<0.000000e+00> : vector<16x56xf32>
    %43 = tpu.matmul %19, %42, %cst {dimension_numbers = #tpu.dot_dimension_numbers<[1], [0], [0], [1], [0, 0, 1, 1], [], []>} : vector<16x36xbf16>, vector<36x56xbf16>, vector<16x56xf32> -> vector<16x56xf32>
    %44 = vector.broadcast %20 : vector<16x1xf32> to vector<16x56xf32>
    %45 = arith.addf %43, %44 : vector<16x56xf32>
    %46 = vector.extract_strided_slice %45 {offsets = [0, 0], sizes = [8, 56], strides = [1, 1]} : vector<16x56xf32> to vector<8x56xf32>
    %47 = vector.extract_strided_slice %45 {offsets = [8, 0], sizes = [8, 56], strides = [1, 1]} : vector<16x56xf32> to vector<8x56xf32>
    %cst_41 = arith.constant 0.000000e+00 : f32
    %48 = vector.shape_cast %18 : vector<1x56xi1> to vector<1x56xi1>
    %49 = vector.broadcast %48 : vector<1x56xi1> to vector<8x56xi1>
    %50 = vector.broadcast %cst_41 : f32 to vector<8x56xf32>
    %51 = arith.select %49, %47, %50 : vector<8x56xi1>, vector<8x56xf32>
    %cst_42 = arith.constant 0.000000e+00 : f32
    %52 = vector.broadcast %cst_42 : f32 to vector<8x9xf32>
    %53 = tpu.concatenate %52, %51, %52 in 1 : vector<8x9xf32>, vector<8x56xf32>, vector<8x9xf32> -> vector<8x74xf32>
    %54 = vector.extract_strided_slice %53 {offsets = [0, 0], sizes = [8, 56], strides = [1, 1]} : vector<8x74xf32> to vector<8x56xf32>
    %55 = vector.extract_strided_slice %53 {offsets = [0, 1], sizes = [8, 56], strides = [1, 1]} : vector<8x74xf32> to vector<8x56xf32>
    %56 = vector.extract_strided_slice %53 {offsets = [0, 2], sizes = [8, 56], strides = [1, 1]} : vector<8x74xf32> to vector<8x56xf32>
    %57 = vector.extract_strided_slice %53 {offsets = [0, 8], sizes = [8, 56], strides = [1, 1]} : vector<8x74xf32> to vector<8x56xf32>
    %58 = vector.extract_strided_slice %53 {offsets = [0, 9], sizes = [8, 56], strides = [1, 1]} : vector<8x74xf32> to vector<8x56xf32>
    %59 = vector.extract_strided_slice %53 {offsets = [0, 10], sizes = [8, 56], strides = [1, 1]} : vector<8x74xf32> to vector<8x56xf32>
    %60 = vector.extract_strided_slice %53 {offsets = [0, 16], sizes = [8, 56], strides = [1, 1]} : vector<8x74xf32> to vector<8x56xf32>
    %61 = vector.extract_strided_slice %53 {offsets = [0, 17], sizes = [8, 56], strides = [1, 1]} : vector<8x74xf32> to vector<8x56xf32>
    %62 = vector.extract_strided_slice %53 {offsets = [0, 18], sizes = [8, 56], strides = [1, 1]} : vector<8x74xf32> to vector<8x56xf32>
    %63 = tpu.concatenate %54, %55, %56, %57, %58, %59, %60, %61, %62 in 0 : vector<8x56xf32>, vector<8x56xf32>, vector<8x56xf32>, vector<8x56xf32>, vector<8x56xf32>, vector<8x56xf32>, vector<8x56xf32>, vector<8x56xf32>, vector<8x56xf32> -> vector<72x56xf32>
    %64 = arith.truncf %63 : vector<72x56xf32> to vector<72x56xbf16>
    %cst_43 = arith.constant dense<0.000000e+00> : vector<8x56xf32>
    %65 = tpu.matmul %21, %64, %cst_43 {dimension_numbers = #tpu.dot_dimension_numbers<[1], [0], [0], [1], [0, 0, 1, 1], [], []>} : vector<8x72xbf16>, vector<72x56xbf16>, vector<8x56xf32> -> vector<8x56xf32>
    %66 = vector.broadcast %22 : vector<8x1xf32> to vector<8x56xf32>
    %67 = arith.addf %65, %66 : vector<8x56xf32>
    %68 = arith.addf %46, %67 : vector<8x56xf32>
    %c0_44 = arith.constant 0 : index
    %c0_45 = arith.constant 0 : index
    %c0_46 = arith.constant 0 : index
    %69 = vector.load %arg6[%c0_44, %c0_45, %c0_46] : memref<2x8x56xf32, #tpu.memory_space<vmem>>, vector<1x8x56xf32>
    %70 = vector.shape_cast %69 : vector<1x8x56xf32> to vector<8x56xf32>
    %71 = vector.shape_cast %68 : vector<8x56xf32> to vector<1x8x56xf32>
    tpu.vector_store %arg6[%c0_44, %c0_45, %c0_46], %71 {strides = array<i32>} : memref<2x8x56xf32, #tpu.memory_space<vmem>>, vector<1x8x56xf32>,
    %c1_47 = arith.constant 1 : index
    %c0_48 = arith.constant 0 : index
    %c0_49 = arith.constant 0 : index
    %c0_50 = arith.constant 0 : index
    %72 = vector.load %arg1[%c1_47, %c0_48, %c0_49, %c0_50] : memref<2x4x4x72xf32, #tpu.memory_space<vmem>>, vector<1x1x4x56xf32>
    %73 = vector.shape_cast %72 : vector<1x1x4x56xf32> to vector<4x56xf32>
    %c1_51 = arith.constant 1 : index
    %c1_52 = arith.constant 1 : index
    %c0_53 = arith.constant 0 : index
    %c0_54 = arith.constant 0 : index
    %74 = vector.load %arg1[%c1_51, %c1_52, %c0_53, %c0_54] : memref<2x4x4x72xf32, #tpu.memory_space<vmem>>, vector<1x1x4x56xf32>
    %75 = vector.shape_cast %74 : vector<1x1x4x56xf32> to vector<4x56xf32>
    %c1_55 = arith.constant 1 : index
    %c0_56 = arith.constant 0 : index
    %c0_57 = arith.constant 0 : index
    %c1_58 = arith.constant 1 : index
    %76 = vector.load %arg1[%c1_55, %c0_56, %c0_57, %c1_58] : memref<2x4x4x72xf32, #tpu.memory_space<vmem>>, vector<1x1x4x56xf32>
    %77 = vector.shape_cast %76 : vector<1x1x4x56xf32> to vector<4x56xf32>
    %c1_59 = arith.constant 1 : index
    %c2_60 = arith.constant 2 : index
    %c0_61 = arith.constant 0 : index
    %c0_62 = arith.constant 0 : index
    %78 = vector.load %arg1[%c1_59, %c2_60, %c0_61, %c0_62] : memref<2x4x4x72xf32, #tpu.memory_space<vmem>>, vector<1x1x4x56xf32>
    %79 = vector.shape_cast %78 : vector<1x1x4x56xf32> to vector<4x56xf32>
    %c1_63 = arith.constant 1 : index
    %c3_64 = arith.constant 3 : index
    %c0_65 = arith.constant 0 : index
    %c0_66 = arith.constant 0 : index
    %80 = vector.load %arg1[%c1_63, %c3_64, %c0_65, %c0_66] : memref<2x4x4x72xf32, #tpu.memory_space<vmem>>, vector<1x1x4x56xf32>
    %81 = vector.shape_cast %80 : vector<1x1x4x56xf32> to vector<4x56xf32>
    %c1_67 = arith.constant 1 : index
    %c2_68 = arith.constant 2 : index
    %c0_69 = arith.constant 0 : index
    %c1_70 = arith.constant 1 : index
    %82 = vector.load %arg1[%c1_67, %c2_68, %c0_69, %c1_70] : memref<2x4x4x72xf32, #tpu.memory_space<vmem>>, vector<1x1x4x56xf32>
    %83 = vector.shape_cast %82 : vector<1x1x4x56xf32> to vector<4x56xf32>
    %c1_71 = arith.constant 1 : index
    %c0_72 = arith.constant 0 : index
    %c0_73 = arith.constant 0 : index
    %c8_74 = arith.constant 8 : index
    %84 = vector.load %arg1[%c1_71, %c0_72, %c0_73, %c8_74] : memref<2x4x4x72xf32, #tpu.memory_space<vmem>>, vector<1x1x4x56xf32>
    %85 = vector.shape_cast %84 : vector<1x1x4x56xf32> to vector<4x56xf32>
    %c1_75 = arith.constant 1 : index
    %c1_76 = arith.constant 1 : index
    %c0_77 = arith.constant 0 : index
    %c8_78 = arith.constant 8 : index
    %86 = vector.load %arg1[%c1_75, %c1_76, %c0_77, %c8_78] : memref<2x4x4x72xf32, #tpu.memory_space<vmem>>, vector<1x1x4x56xf32>
    %87 = vector.shape_cast %86 : vector<1x1x4x56xf32> to vector<4x56xf32>
    %c1_79 = arith.constant 1 : index
    %c0_80 = arith.constant 0 : index
    %c0_81 = arith.constant 0 : index
    %c9_82 = arith.constant 9 : index
    %88 = vector.load %arg1[%c1_79, %c0_80, %c0_81, %c9_82] : memref<2x4x4x72xf32, #tpu.memory_space<vmem>>, vector<1x1x4x56xf32>
    %89 = vector.shape_cast %88 : vector<1x1x4x56xf32> to vector<4x56xf32>
    %90 = tpu.concatenate %73, %75, %77, %79, %81, %83, %85, %87, %89 in 0 : vector<4x56xf32>, vector<4x56xf32>, vector<4x56xf32>, vector<4x56xf32>, vector<4x56xf32>, vector<4x56xf32>, vector<4x56xf32>, vector<4x56xf32>, vector<4x56xf32> -> vector<36x56xf32>
    %91 = arith.truncf %90 : vector<36x56xf32> to vector<36x56xbf16>
    %cst_83 = arith.constant dense<0.000000e+00> : vector<16x56xf32>
    %92 = tpu.matmul %19, %91, %cst_83 {dimension_numbers = #tpu.dot_dimension_numbers<[1], [0], [0], [1], [0, 0, 1, 1], [], []>} : vector<16x36xbf16>, vector<36x56xbf16>, vector<16x56xf32> -> vector<16x56xf32>
    %93 = vector.broadcast %20 : vector<16x1xf32> to vector<16x56xf32>
    %94 = arith.addf %92, %93 : vector<16x56xf32>
    %95 = vector.extract_strided_slice %94 {offsets = [0, 0], sizes = [8, 56], strides = [1, 1]} : vector<16x56xf32> to vector<8x56xf32>
    %96 = vector.extract_strided_slice %94 {offsets = [8, 0], sizes = [8, 56], strides = [1, 1]} : vector<16x56xf32> to vector<8x56xf32>
    %cst_84 = arith.constant 0.000000e+00 : f32
    %97 = vector.shape_cast %18 : vector<1x56xi1> to vector<1x56xi1>
    %98 = vector.broadcast %97 : vector<1x56xi1> to vector<8x56xi1>
    %99 = vector.broadcast %cst_84 : f32 to vector<8x56xf32>
    %100 = arith.select %98, %96, %99 : vector<8x56xi1>, vector<8x56xf32>
    %cst_85 = arith.constant 0.000000e+00 : f32
    %101 = vector.broadcast %cst_85 : f32 to vector<8x9xf32>
    %102 = tpu.concatenate %101, %100, %101 in 1 : vector<8x9xf32>, vector<8x56xf32>, vector<8x9xf32> -> vector<8x74xf32>
    %103 = vector.extract_strided_slice %102 {offsets = [0, 0], sizes = [8, 56], strides = [1, 1]} : vector<8x74xf32> to vector<8x56xf32>
    %104 = vector.extract_strided_slice %102 {offsets = [0, 1], sizes = [8, 56], strides = [1, 1]} : vector<8x74xf32> to vector<8x56xf32>
    %105 = vector.extract_strided_slice %102 {offsets = [0, 2], sizes = [8, 56], strides = [1, 1]} : vector<8x74xf32> to vector<8x56xf32>
    %106 = vector.extract_strided_slice %102 {offsets = [0, 8], sizes = [8, 56], strides = [1, 1]} : vector<8x74xf32> to vector<8x56xf32>
    %107 = vector.extract_strided_slice %102 {offsets = [0, 9], sizes = [8, 56], strides = [1, 1]} : vector<8x74xf32> to vector<8x56xf32>
    %108 = vector.extract_strided_slice %102 {offsets = [0, 10], sizes = [8, 56], strides = [1, 1]} : vector<8x74xf32> to vector<8x56xf32>
    %109 = vector.extract_strided_slice %102 {offsets = [0, 16], sizes = [8, 56], strides = [1, 1]} : vector<8x74xf32> to vector<8x56xf32>
    %110 = vector.extract_strided_slice %102 {offsets = [0, 17], sizes = [8, 56], strides = [1, 1]} : vector<8x74xf32> to vector<8x56xf32>
    %111 = vector.extract_strided_slice %102 {offsets = [0, 18], sizes = [8, 56], strides = [1, 1]} : vector<8x74xf32> to vector<8x56xf32>
    %112 = tpu.concatenate %103, %104, %105, %106, %107, %108, %109, %110, %111 in 0 : vector<8x56xf32>, vector<8x56xf32>, vector<8x56xf32>, vector<8x56xf32>, vector<8x56xf32>, vector<8x56xf32>, vector<8x56xf32>, vector<8x56xf32>, vector<8x56xf32> -> vector<72x56xf32>
    %113 = arith.truncf %112 : vector<72x56xf32> to vector<72x56xbf16>
    %cst_86 = arith.constant dense<0.000000e+00> : vector<8x56xf32>
    %114 = tpu.matmul %21, %113, %cst_86 {dimension_numbers = #tpu.dot_dimension_numbers<[1], [0], [0], [1], [0, 0, 1, 1], [], []>} : vector<8x72xbf16>, vector<72x56xbf16>, vector<8x56xf32> -> vector<8x56xf32>
    %115 = vector.broadcast %22 : vector<8x1xf32> to vector<8x56xf32>
    %116 = arith.addf %114, %115 : vector<8x56xf32>
    %117 = arith.addf %95, %116 : vector<8x56xf32>
    %c1_87 = arith.constant 1 : index
    %c0_88 = arith.constant 0 : index
    %c0_89 = arith.constant 0 : index
    %118 = vector.load %arg6[%c1_87, %c0_88, %c0_89] : memref<2x8x56xf32, #tpu.memory_space<vmem>>, vector<1x8x56xf32>
    %119 = vector.shape_cast %118 : vector<1x8x56xf32> to vector<8x56xf32>
    %120 = vector.shape_cast %117 : vector<8x56xf32> to vector<1x8x56xf32>
    tpu.vector_store %arg6[%c1_87, %c0_88, %c0_89], %120 {strides = array<i32>} : memref<2x8x56xf32, #tpu.memory_space<vmem>>, vector<1x8x56xf32>,
    return
  }
  func.func @transform_0(%arg0: i32) -> (i32, i32, i32, i32) {
    %c0_i32 = arith.constant 0 : i32
    %c0_i32_0 = arith.constant 0 : i32
    %c0_i32_1 = arith.constant 0 : i32
    %c0_i32_2 = arith.constant 0 : i32
    return %arg0, %c0_i32, %c0_i32_0, %c0_i32_1 : i32, i32, i32, i32
  }
  func.func @transform_1(%arg0: i32) -> (i32, i32) {
    %c0_i32 = arith.constant 0 : i32
    %c0_i32_0 = arith.constant 0 : i32
    %c0_i32_1 = arith.constant 0 : i32
    return %c0_i32, %c0_i32_0 : i32, i32
  }
  func.func @transform_2(%arg0: i32) -> (i32, i32) {
    %c0_i32 = arith.constant 0 : i32
    %c0_i32_0 = arith.constant 0 : i32
    %c0_i32_1 = arith.constant 0 : i32
    return %c0_i32, %c0_i32_0 : i32, i32
  }
  func.func @transform_3(%arg0: i32) -> (i32, i32) {
    %c0_i32 = arith.constant 0 : i32
    %c0_i32_0 = arith.constant 0 : i32
    %c0_i32_1 = arith.constant 0 : i32
    return %c0_i32, %c0_i32_0 : i32, i32
  }
  func.func @transform_4(%arg0: i32) -> (i32, i32) {
    %c0_i32 = arith.constant 0 : i32
    %c0_i32_0 = arith.constant 0 : i32
    %c0_i32_1 = arith.constant 0 : i32
    return %c0_i32, %c0_i32_0 : i32, i32
  }
  func.func @transform_5(%arg0: i32) -> (i32, i32, i32) {
    %c0_i32 = arith.constant 0 : i32
    %c0_i32_0 = arith.constant 0 : i32
    %c0_i32_1 = arith.constant 0 : i32
    return %arg0, %c0_i32, %c0_i32_0 : i32, i32, i32
  }
}

</mosaic_0001>

<llo_original>
// kernel: tpu_custom_call.1
$region0: #{tpu_custom_call.1}
  #allocation0 [shape = 'u32[]', space=smem, size = 0x4, offset = 0x4, fixed_abs, tag = 'smem constant byte address 0x4 - core index']
  #allocation1 [shape = 'u32[144,128]{1,0:T(1,128)}', space=vmem, size = 0x12000, scoped, tag = 'internal scratch']
  %s0 = inlined_call_operand.hbm [shape: f32[2,4,4,72], index: 0, kind: input, shape index: {}]
  %s1 = inlined_call_operand.vmem [shape: bf16[16,36], index: 1, kind: input, shape index: {}]
  %s2 = inlined_call_operand.vmem [shape: f32[16,1], index: 2, kind: input, shape index: {}]
  %s3 = inlined_call_operand.vmem [shape: bf16[8,72], index: 3, kind: input, shape index: {}]
  %s4 = inlined_call_operand.vmem [shape: f32[8,1], index: 4, kind: input, shape index: {}]
  %s5 = inlined_call_operand.hbm [shape: f32[2,8,56], index: 5, kind: output, shape index: {}]
  %s6 = sld [smem:[#allocation0]]
  $region34: #{tpu_custom_call.1} parent=0
    _
  %s8 = ssub.s32 1, %s6
  %s9 = scalar_select 0, %s8, %s6
  $region1: #{tpu_custom_call.1} parent=0
    #allocation2 [shape = 'u8[16384]{0}', space=vmem, size = 0x4000, scoped, tag = 'input window, operand 0, single buffered']
    #allocation3 [shape = 's32[1]{0}', space=sflag, size = 0x4, scoped, tag = 'scoped memory for tpu_custom_call.1']
    #allocation4 [shape = 's32[1]{0}', space=sflag, size = 0x4, scoped, tag = 'scoped memory for tpu_custom_call.1']
    #allocation5 [shape = 'u8[8192]{0}', space=vmem, size = 0x2000, scoped, tag = 'output window, operand 0, single buffered']
    %10 = vsyncpa [#allocation3], 0
    %11 = vsyncpa [#allocation4], 0
    // Predicated region
    $region2: #{tpu_custom_call.1} parent=1 // pred_check
      _
    $region3: #{tpu_custom_call.1} parent=1 // pred_check_branch
      %13 = sbr.rel (0) target = $region5
    $region4: #{tpu_custom_call.1} parent=1 // pred_region
      %s15 = ssub.s32 512, 512
      %16 = vsyncadd [#allocation3], %s15
      %s17 = sshll.u32 [#allocation2], 4
      %s18 = int_to_ptr.vmem [resolvable:$true] %s17
      %23 = dma.hbm_to_vmem [thread:$0]  %s0, 512, %s18, [#allocation3], 64, 64, 4
    $region5: #{tpu_custom_call.1} parent=1 // pred_fallthru
      _
    // Predicated region
    $region6: #{tpu_custom_call.1} parent=1 // pred_check
      _
    $region7: #{tpu_custom_call.1} parent=1 // pred_check_branch
      %25 = sbr.rel (0) target = $region9
    $region8: #{tpu_custom_call.1} parent=1 // pred_region
      _
    $region9: #{tpu_custom_call.1} parent=1 // pred_fallthru
      _
    // Predicated region
    $region10: #{tpu_custom_call.1} parent=1 // pred_check
      _
    $region11: #{tpu_custom_call.1} parent=1 // pred_check_branch
      %27 = sbr.rel (0) target = $region13
    $region12: #{tpu_custom_call.1} parent=1 // pred_region
      _
    $region13: #{tpu_custom_call.1} parent=1 // pred_fallthru
      _
    // Predicated region
    $region14: #{tpu_custom_call.1} parent=1 // pred_check
      _
    $region15: #{tpu_custom_call.1} parent=1 // pred_check_branch
      %29 = sbr.rel (0) target = $region17
    $region16: #{tpu_custom_call.1} parent=1 // pred_region
      _
    $region17: #{tpu_custom_call.1} parent=1 // pred_fallthru
      _
    // Predicated region
    $region18: #{tpu_custom_call.1} parent=1 // pred_check
      _
    $region19: #{tpu_custom_call.1} parent=1 // pred_check_branch
      %31 = sbr.rel (0) target = $region21
    $region20: #{tpu_custom_call.1} parent=1 // pred_region
      _
    $region21: #{tpu_custom_call.1} parent=1 // pred_fallthru
      _
    // Predicated region
    $region22: #{tpu_custom_call.1} parent=1 // pred_check
      _
    $region23: #{tpu_custom_call.1} parent=1 // pred_check_branch
      %33 = sbr.rel (0) target = $region25
    $region24: #{tpu_custom_call.1} parent=1 // pred_region
      %34 = dma.done [#allocation3], 512
    $region25: #{tpu_custom_call.1} parent=1 // pred_fallthru
      _
    %v36 = vlaneseq
    %v37 = vand.u32 %v36, 127
    %vm38 = vcmp.lt.s32.totalorder %v37, 0
    %v39 = vsub.s32 0, %v37
    %v40 = vsel %vm38, %v39, %v37
    %v41 = vshrl.u32 %v40, 3
    %v42 = vand.u32 %v40, 7
    %v43 = vsub.s32 0, %v42
    %v44 = vsel %vm38, %v43, %v42
    %vm45 = vcmp.ne.s32.totalorder %v44, 0
    %vm46 = vcmp.lt.s32.totalorder %v44, 0
    %vm47 = vmand %vm46, %vm45
    %v48 = vadd.s32 %v44, 8
    %v49 = vsel %vm47, %v48, %v44
    %vm50 = vcmp.lt.s32.totalorder %v49, 7
    %v51 = vld [vmem:[%s1] sm:$0xf]
    %v52 = vld [vmem:[%s1 + $0x4] sm:$0xf]
    %v53 = vld [vmem:[%s2] sm:$0xff]
    %v54 = vld [vmem:[%s2 + $0x8] sm:$0xff]
    %v55 = vld [vmem:[%s3] sm:$0xf]
    %v56 = vld [vmem:[%s4] sm:$0xff]
    %v57 = vld [vmem:[#allocation2] sm:$0xf]
    %s58 = scalar_lea.vmem [#allocation2], 4
    %v59 = vld [vmem:[%s58] sm:$0xf]
    %s60 = scalar_lea.vmem [#allocation2], 8
    %v61 = vld [vmem:[%s60] sm:$0xf]
    %s62 = scalar_lea.vmem [#allocation2], 12
    %v63 = vld [vmem:[%s62] sm:$0xf]
    %v65 = vrot.slane %v59, 4
    %68 = vrot.lane.b32.xlu0 %v57, 127
    %v69 = vpop.permute.xlu0 %68
    %v72 = vrot.slane %v61, 4
    %74 = vrot.lane.b32.xlu0 %v72, 127
    %v75 = vpop.permute.xlu0 %74
    %77 = vrot.lane.b32.xlu0 %v57, 120
    %v78 = vpop.permute.xlu0 %77
    %80 = vrot.lane.b32.xlu0 %v65, 120
    %v81 = vpop.permute.xlu0 %80
    %83 = vrot.lane.b32.xlu0 %v57, 119
    %v84 = vpop.permute.xlu0 %83
    %vm86 = vcmask 1043456
    %v87 = vsel %vm86, %v57, %v65
    %v88 = vsel %vm86, %v69, %v72
    %v89 = vsel %vm86, %v63, %v75
    %v90 = vsel %vm86, %v78, %v81
    %v91 = vpack.c.bf16 %v88, %v87
    %v92 = vpack.c.bf16 %v90, %v89
    %v93 = vpack.c.bf16 %v84, %v84
    %95 = vset.pattern.permute.xlu0 0
    %96 = vperm.xlu0 %95, %v53
    %v97 = vpop.permute.xlu0 %96
    %100 = vset.pattern.permute.xlu0 0
    %101 = vperm.xlu0 %100, %v54
    %v102 = vpop.permute.xlu0 %101
    %v106 = vunpack.c.l.b16 %v51
    %v107 = vunpack.c.l.b16 %v52
    %v108 = vpack.c.b16 %v107, %v106
    %vm109 = vcmask 293888
    %v111 = vsel %vm109, %v108, 0
    %vm113 = vcmask 1041408
    %v115 = vsel %vm113, %v93, 0
    %117 = vmatprep.subr.bf16.mxu0 0
    %118 = vmatpush1.bf16.msra.mxu0 0
    %119 = vmatprep.subr.bf16.mxu0 0
    %120 = vmatpush1.bf16.msra.mxu0 0
    %121 = vmatprep.subr.bf16.mxu0 0
    %122 = vmatpush1.bf16.msra.mxu0 0
    %123 = vmatprep.subr.bf16.mxu0 0
    %124 = vmatpush1.bf16.msra.mxu0 0
    %125 = vmatprep.subr.bf16.mxu0 0
    %126 = vmatpush1.bf16.msra.mxu0 0
    %127 = vmatprep.subr.bf16.mxu0 0
    %128 = vmatpush1.bf16.msra.mxu0 %v115
    %129 = vmatprep.subr.bf16.mxu0 0
    %130 = vmatpush1.bf16.msra.mxu0 %v92
    %131 = vmatprep.subr.bf16.mxu0 0
    %132 = vmatpush1.bf16.msra.mxu0 %v91
    %133 = vmatprep.subr.bf16.mxu0 0
    %134 = vmatpush2.bf16.msra.mxu0 0
    %135 = vmatprep.subr.bf16.mxu0 0
    %136 = vmatpush2.bf16.msra.mxu0 0
    %137 = vmatprep.subr.bf16.mxu0 0
    %138 = vmatpush2.bf16.msra.mxu0 0
    %139 = vmatprep.subr.bf16.mxu0 0
    %140 = vmatpush2.bf16.msra.mxu0 0
    %141 = vmatprep.subr.bf16.mxu0 0
    %142 = vmatpush2.bf16.msra.mxu0 0
    %143 = vmatprep.subr.bf16.mxu0 0
    %144 = vmatpush2.bf16.msra.mxu0 0
    %145 = vmatprep.subr.bf16.mxu0 0
    %146 = vmatpush2.bf16.msra.mxu0 0
    %147 = vmatprep.subr.bf16.mxu0 0
    %148 = vmatpush2.bf16.msra.mxu0 0
    %149 = vmatprep.mubr.bf16.mxu0 0
    %150 = vmatmul.mubr.bf16.gmra.mxu0 %v111
    %v151 = vpop.f32.mrf.mxu0
    %v152 = vadd.f32 %v97, %v151
    %v153 = vpop.f32.mrf.mxu0
    %v154 = vpop.f32.mrf.mxu0
    %v155 = vadd.f32 %v102, %v154
    %v156 = vpop.f32.mrf.mxu0
    %157 = vdwg.mxu0
    %v158 = vsel %vm50, 1, 0
    %vm159 = vcmp.eq.s32.totalorder %v158, 1
    %v160 = vsel %vm159, %v155, 0.0
    %162 = vrot.lane.b32.xlu0 %v160, 9
    %v163 = vpop.permute.xlu0 %162
    %vm165 = vcmask 72704
    %v166 = vsel %vm165, 0.0, %v163
    %vm167 = vcmask 531456
    %v168 = vsel %vm167, %v166, 0.0
    %170 = vrot.lane.b32.xlu0 %v168, 127
    %v171 = vpop.permute.xlu0 %170
    %173 = vrot.lane.b32.xlu0 %v168, 126
    %v174 = vpop.permute.xlu0 %173
    %176 = vrot.lane.b32.xlu0 %v168, 120
    %v177 = vpop.permute.xlu0 %176
    %179 = vrot.lane.b32.xlu0 %v168, 119
    %v180 = vpop.permute.xlu0 %179
    %182 = vrot.lane.b32.xlu0 %v168, 118
    %v183 = vpop.permute.xlu0 %182
    %185 = vrot.lane.b32.xlu0 %v168, 112
    %v186 = vpop.permute.xlu0 %185
    %188 = vrot.lane.b32.xlu0 %v168, 111
    %v189 = vpop.permute.xlu0 %188
    %191 = vrot.lane.b32.xlu0 %v168, 110
    %v192 = vpop.permute.xlu0 %191
    %v194 = vpack.c.bf16 %v171, %v168
    %v195 = vpack.c.bf16 %v177, %v174
    %v196 = vpack.c.bf16 %v183, %v180
    %v197 = vpack.c.bf16 %v189, %v186
    %v198 = vpack.c.bf16 %v192, %v192
    %200 = vset.pattern.permute.xlu0 0
    %201 = vperm.xlu0 %200, %v56
    %v202 = vpop.permute.xlu0 %201
    %vm204 = vcmask 588800
    %v206 = vsel %vm204, %v55, 0
    %v209 = vsel %vm86, %v198, 0
    %211 = vmatprep.subr.bf16.mxu0 0
    %212 = vmatpush1.bf16.msra.mxu0 0
    %213 = vmatprep.subr.bf16.mxu0 0
    %214 = vmatpush1.bf16.msra.mxu0 0
    %215 = vmatprep.subr.bf16.mxu0 0
    %216 = vmatpush1.bf16.msra.mxu0 0
    %217 = vmatprep.subr.bf16.mxu0 0
    %218 = vmatpush1.bf16.msra.mxu0 %v209
    %219 = vmatprep.subr.bf16.mxu0 0
    %220 = vmatpush1.bf16.msra.mxu0 %v197
    %221 = vmatprep.subr.bf16.mxu0 0
    %222 = vmatpush1.bf16.msra.mxu0 %v196
    %223 = vmatprep.subr.bf16.mxu0 0
    %224 = vmatpush1.bf16.msra.mxu0 %v195
    %225 = vmatprep.subr.bf16.mxu0 0
    %226 = vmatpush1.bf16.msra.mxu0 %v194
    %227 = vmatprep.subr.bf16.mxu0 0
    %228 = vmatpush2.bf16.msra.mxu0 0
    %229 = vmatprep.subr.bf16.mxu0 0
    %230 = vmatpush2.bf16.msra.mxu0 0
    %231 = vmatprep.subr.bf16.mxu0 0
    %232 = vmatpush2.bf16.msra.mxu0 0
    %233 = vmatprep.subr.bf16.mxu0 0
    %234 = vmatpush2.bf16.msra.mxu0 0
    %235 = vmatprep.subr.bf16.mxu0 0
    %236 = vmatpush2.bf16.msra.mxu0 0
    %237 = vmatprep.subr.bf16.mxu0 0
    %238 = vmatpush2.bf16.msra.mxu0 0
    %239 = vmatprep.subr.bf16.mxu0 0
    %240 = vmatpush2.bf16.msra.mxu0 0
    %241 = vmatprep.subr.bf16.mxu0 0
    %242 = vmatpush2.bf16.msra.mxu0 0
    %243 = vmatprep.mubr.bf16.mxu0 0
    %244 = vmatmul.mubr.bf16.gmra.mxu0 %v206
    %v245 = vpop.f32.mrf.mxu0
    %v246 = vadd.f32 %v202, %v245
    %v247 = vpop.f32.mrf.mxu0
    %v248 = vpop.f32.mrf.mxu0
    %v249 = vpop.f32.mrf.mxu0
    %250 = vdwg.mxu0
    %v251 = vadd.f32 %v152, %v246
    %vm252 = vcmask 457728
    %253 = vst.msk [vmem:[#allocation5] sm:$0xff] %vm252, %v251
    %s254 = scalar_lea.vmem [#allocation2], 16
    %v255 = vld [vmem:[%s254] sm:$0xf]
    %s256 = scalar_lea.vmem [#allocation2], 20
    %v257 = vld [vmem:[%s256] sm:$0xf]
    %s258 = scalar_lea.vmem [#allocation2], 24
    %v259 = vld [vmem:[%s258] sm:$0xf]
    %s260 = scalar_lea.vmem [#allocation2], 28
    %v261 = vld [vmem:[%s260] sm:$0xf]
    %v263 = vrot.slane %v257, 4
    %266 = vrot.lane.b32.xlu0 %v255, 127
    %v267 = vpop.permute.xlu0 %266
    %v270 = vrot.slane %v259, 4
    %272 = vrot.lane.b32.xlu0 %v270, 127
    %v273 = vpop.permute.xlu0 %272
    %275 = vrot.lane.b32.xlu0 %v255, 120
    %v276 = vpop.permute.xlu0 %275
    %278 = vrot.lane.b32.xlu0 %v263, 120
    %v279 = vpop.permute.xlu0 %278
    %281 = vrot.lane.b32.xlu0 %v255, 119
    %v282 = vpop.permute.xlu0 %281
    %v284 = vsel %vm86, %v255, %v263
    %v285 = vsel %vm86, %v267, %v270
    %v286 = vsel %vm86, %v261, %v273
    %v287 = vsel %vm86, %v276, %v279
    %v288 = vpack.c.bf16 %v285, %v284
    %v289 = vpack.c.bf16 %v287, %v286
    %v290 = vpack.c.bf16 %v282, %v282
    %v292 = vsel %vm113, %v290, 0
    %294 = vmatprep.subr.bf16.mxu0 0
    %295 = vmatpush1.bf16.msra.mxu0 0
    %296 = vmatprep.subr.bf16.mxu0 0
    %297 = vmatpush1.bf16.msra.mxu0 0
    %298 = vmatprep.subr.bf16.mxu0 0
    %299 = vmatpush1.bf16.msra.mxu0 0
    %300 = vmatprep.subr.bf16.mxu0 0
    %301 = vmatpush1.bf16.msra.mxu0 0
    %302 = vmatprep.subr.bf16.mxu0 0
    %303 = vmatpush1.bf16.msra.mxu0 0
    %304 = vmatprep.subr.bf16.mxu0 0
    %305 = vmatpush1.bf16.msra.mxu0 %v292
    %306 = vmatprep.subr.bf16.mxu0 0
    %307 = vmatpush1.bf16.msra.mxu0 %v289
    %308 = vmatprep.subr.bf16.mxu0 0
    %309 = vmatpush1.bf16.msra.mxu0 %v288
    %310 = vmatprep.subr.bf16.mxu0 0
    %311 = vmatpush2.bf16.msra.mxu0 0
    %312 = vmatprep.subr.bf16.mxu0 0
    %313 = vmatpush2.bf16.msra.mxu0 0
    %314 = vmatprep.subr.bf16.mxu0 0
    %315 = vmatpush2.bf16.msra.mxu0 0
    %316 = vmatprep.subr.bf16.mxu0 0
    %317 = vmatpush2.bf16.msra.mxu0 0
    %318 = vmatprep.subr.bf16.mxu0 0
    %319 = vmatpush2.bf16.msra.mxu0 0
    %320 = vmatprep.subr.bf16.mxu0 0
    %321 = vmatpush2.bf16.msra.mxu0 0
    %322 = vmatprep.subr.bf16.mxu0 0
    %323 = vmatpush2.bf16.msra.mxu0 0
    %324 = vmatprep.subr.bf16.mxu0 0
    %325 = vmatpush2.bf16.msra.mxu0 0
    %326 = vmatprep.mubr.bf16.mxu0 0
    %327 = vmatmul.mubr.bf16.gmra.mxu0 %v111
    %v328 = vpop.f32.mrf.mxu0
    %v329 = vadd.f32 %v97, %v328
    %v330 = vpop.f32.mrf.mxu0
    %v331 = vpop.f32.mrf.mxu0
    %v332 = vadd.f32 %v102, %v331
    %v333 = vpop.f32.mrf.mxu0
    %334 = vdwg.mxu0
    %v335 = vsel %vm159, %v332, 0.0
    %337 = vrot.lane.b32.xlu0 %v335, 9
    %v338 = vpop.permute.xlu0 %337
    %v340 = vsel %vm165, 0.0, %v338
    %v341 = vsel %vm167, %v340, 0.0
    %343 = vrot.lane.b32.xlu0 %v341, 127
    %v344 = vpop.permute.xlu0 %343
    %346 = vrot.lane.b32.xlu0 %v341, 126
    %v347 = vpop.permute.xlu0 %346
    %349 = vrot.lane.b32.xlu0 %v341, 120
    %v350 = vpop.permute.xlu0 %349
    %352 = vrot.lane.b32.xlu0 %v341, 119
    %v353 = vpop.permute.xlu0 %352
    %355 = vrot.lane.b32.xlu0 %v341, 118
    %v356 = vpop.permute.xlu0 %355
    %358 = vrot.lane.b32.xlu0 %v341, 112
    %v359 = vpop.permute.xlu0 %358
    %361 = vrot.lane.b32.xlu0 %v341, 111
    %v362 = vpop.permute.xlu0 %361
    %364 = vrot.lane.b32.xlu0 %v341, 110
    %v365 = vpop.permute.xlu0 %364
    %v367 = vpack.c.bf16 %v344, %v341
    %v368 = vpack.c.bf16 %v350, %v347
    %v369 = vpack.c.bf16 %v356, %v353
    %v370 = vpack.c.bf16 %v362, %v359
    %v371 = vpack.c.bf16 %v365, %v365
    %v373 = vsel %vm86, %v371, 0
    %375 = vmatprep.subr.bf16.mxu0 0
    %376 = vmatpush1.bf16.msra.mxu0 0
    %377 = vmatprep.subr.bf16.mxu0 0
    %378 = vmatpush1.bf16.msra.mxu0 0
    %379 = vmatprep.subr.bf16.mxu0 0
    %380 = vmatpush1.bf16.msra.mxu0 0
    %381 = vmatprep.subr.bf16.mxu0 0
    %382 = vmatpush1.bf16.msra.mxu0 %v373
    %383 = vmatprep.subr.bf16.mxu0 0
    %384 = vmatpush1.bf16.msra.mxu0 %v370
    %385 = vmatprep.subr.bf16.mxu0 0
    %386 = vmatpush1.bf16.msra.mxu0 %v369
    %387 = vmatprep.subr.bf16.mxu0 0
    %388 = vmatpush1.bf16.msra.mxu0 %v368
    %389 = vmatprep.subr.bf16.mxu0 0
    %390 = vmatpush1.bf16.msra.mxu0 %v367
    %391 = vmatprep.subr.bf16.mxu0 0
    %392 = vmatpush2.bf16.msra.mxu0 0
    %393 = vmatprep.subr.bf16.mxu0 0
    %394 = vmatpush2.bf16.msra.mxu0 0
    %395 = vmatprep.subr.bf16.mxu0 0
    %396 = vmatpush2.bf16.msra.mxu0 0
    %397 = vmatprep.subr.bf16.mxu0 0
    %398 = vmatpush2.bf16.msra.mxu0 0
    %399 = vmatprep.subr.bf16.mxu0 0
    %400 = vmatpush2.bf16.msra.mxu0 0
    %401 = vmatprep.subr.bf16.mxu0 0
    %402 = vmatpush2.bf16.msra.mxu0 0
    %403 = vmatprep.subr.bf16.mxu0 0
    %404 = vmatpush2.bf16.msra.mxu0 0
    %405 = vmatprep.subr.bf16.mxu0 0
    %406 = vmatpush2.bf16.msra.mxu0 0
    %407 = vmatprep.mubr.bf16.mxu0 0
    %408 = vmatmul.mubr.bf16.gmra.mxu0 %v206
    %v409 = vpop.f32.mrf.mxu0
    %v410 = vadd.f32 %v202, %v409
    %v411 = vpop.f32.mrf.mxu0
    %v412 = vpop.f32.mrf.mxu0
    %v413 = vpop.f32.mrf.mxu0
    %414 = vdwg.mxu0
    %v415 = vadd.f32 %v329, %v410
    %s416 = scalar_lea.vmem [#allocation5], 8
    %417 = vst.msk [vmem:[%s416] sm:$0xff] %vm252, %v415
    // Predicated region
    $region26: #{tpu_custom_call.1} parent=1 // pred_check
      _
    $region27: #{tpu_custom_call.1} parent=1 // pred_check_branch
      %419 = sbr.rel (0) target = $region29
    $region28: #{tpu_custom_call.1} parent=1 // pred_region
      %s421 = ssub.s32 256, 256
      %422 = vsyncadd [#allocation4], %s421
      %s423 = sshll.u32 [#allocation5], 4
      %s424 = int_to_ptr.vmem [resolvable:$true] %s423
      %429 = dma.vmem_to_hbm [thread:$0]  %s424, 256, %s5, [#allocation4], 128, 128, 8
    $region29: #{tpu_custom_call.1} parent=1 // pred_fallthru
      _
    // Predicated region
    $region30: #{tpu_custom_call.1} parent=1 // pred_check
      _
    $region31: #{tpu_custom_call.1} parent=1 // pred_check_branch
      %431 = sbr.rel (0) target = $region33
    $region32: #{tpu_custom_call.1} parent=1 // pred_region
      %432 = dma.done [#allocation4], 256
    $region33: #{tpu_custom_call.1} parent=1 // pred_fallthru
      _
    %433 = vsyncpa [#allocation3], 1
    %434 = vsyncpa [#allocation4], 1

// kernel: tpu_custom_call.1
$region0: #{tpu_custom_call.1}
  #allocation0 [shape = 'u32[]', space=smem, size = 0x4, offset = 0x4, fixed_abs, tag = 'smem constant byte address 0x4 - core index']
  #allocation1 [shape = 'u32[144,128]{1,0:T(1,128)}', space=vmem, size = 0x12000, scoped, tag = 'internal scratch']
  %s0 = inlined_call_operand.hbm [shape: f32[2,4,4,72], index: 0, kind: input, shape index: {}]
  %s1 = inlined_call_operand.vmem [shape: bf16[16,36], index: 1, kind: input, shape index: {}]
  %s2 = inlined_call_operand.vmem [shape: f32[16,1], index: 2, kind: input, shape index: {}]
  %s3 = inlined_call_operand.vmem [shape: bf16[8,72], index: 3, kind: input, shape index: {}]
  %s4 = inlined_call_operand.vmem [shape: f32[8,1], index: 4, kind: input, shape index: {}]
  %s5 = inlined_call_operand.hbm [shape: f32[2,8,56], index: 5, kind: output, shape index: {}]
  %s6 = sld [smem:[#allocation0]]
  $region34: #{tpu_custom_call.1} parent=0
    _
  %s8 = ssub.s32 1, %s6
  %s9 = scalar_select 0, %s8, %s6
  $region1: #{tpu_custom_call.1} parent=0
    #allocation2 [shape = 'u8[16384]{0}', space=vmem, size = 0x4000, scoped, tag = 'input window, operand 0, single buffered']
    #allocation3 [shape = 's32[1]{0}', space=sflag, size = 0x4, scoped, tag = 'scoped memory for tpu_custom_call.1']
    #allocation4 [shape = 's32[1]{0}', space=sflag, size = 0x4, scoped, tag = 'scoped memory for tpu_custom_call.1']
    #allocation5 [shape = 'u8[8192]{0}', space=vmem, size = 0x2000, scoped, tag = 'output window, operand 0, single buffered']
    %10 = vsyncpa [#allocation3], 0
    %11 = vsyncpa [#allocation4], 0
    // Predicated region
    $region2: #{tpu_custom_call.1} parent=1 // pred_check
      _
    $region3: #{tpu_custom_call.1} parent=1 // pred_check_branch
      %13 = sbr.rel (0) target = $region5
    $region4: #{tpu_custom_call.1} parent=1 // pred_region
      %s15 = ssub.s32 512, 512
      %16 = vsyncadd [#allocation3], %s15
      %s17 = sshll.u32 [#allocation2], 4
      %s18 = int_to_ptr.vmem [resolvable:$true] %s17
      %23 = dma.hbm_to_vmem [thread:$0]  %s0, 512, %s18, [#allocation3], 64, 64, 4
    $region5: #{tpu_custom_call.1} parent=1 // pred_fallthru
      _
    // Predicated region
    $region6: #{tpu_custom_call.1} parent=1 // pred_check
      _
    $region7: #{tpu_custom_call.1} parent=1 // pred_check_branch
      %25 = sbr.rel (0) target = $region9
    $region8: #{tpu_custom_call.1} parent=1 // pred_region
      _
    $region9: #{tpu_custom_call.1} parent=1 // pred_fallthru
      _
    // Predicated region
    $region10: #{tpu_custom_call.1} parent=1 // pred_check
      _
    $region11: #{tpu_custom_call.1} parent=1 // pred_check_branch
      %27 = sbr.rel (0) target = $region13
    $region12: #{tpu_custom_call.1} parent=1 // pred_region
      _
    $region13: #{tpu_custom_call.1} parent=1 // pred_fallthru
      _
    // Predicated region
    $region14: #{tpu_custom_call.1} parent=1 // pred_check
      _
    $region15: #{tpu_custom_call.1} parent=1 // pred_check_branch
      %29 = sbr.rel (0) target = $region17
    $region16: #{tpu_custom_call.1} parent=1 // pred_region
      _
    $region17: #{tpu_custom_call.1} parent=1 // pred_fallthru
      _
    // Predicated region
    $region18: #{tpu_custom_call.1} parent=1 // pred_check
      _
    $region19: #{tpu_custom_call.1} parent=1 // pred_check_branch
      %31 = sbr.rel (0) target = $region21
    $region20: #{tpu_custom_call.1} parent=1 // pred_region
      _
    $region21: #{tpu_custom_call.1} parent=1 // pred_fallthru
      _
    // Predicated region
    $region22: #{tpu_custom_call.1} parent=1 // pred_check
      _
    $region23: #{tpu_custom_call.1} parent=1 // pred_check_branch
      %33 = sbr.rel (0) target = $region25
    $region24: #{tpu_custom_call.1} parent=1 // pred_region
      %34 = dma.done [#allocation3], 512
    $region25: #{tpu_custom_call.1} parent=1 // pred_fallthru
      _
    %v36 = vlaneseq
    %v37 = vand.u32 %v36, 127
    %vm38 = vcmp.lt.s32.totalorder %v37, 0
    %v39 = vsub.s32 0, %v37
    %v40 = vsel %vm38, %v39, %v37
    %v41 = vshrl.u32 %v40, 3
    %v42 = vand.u32 %v40, 7
    %v43 = vsub.s32 0, %v42
    %v44 = vsel %vm38, %v43, %v42
    %vm45 = vcmp.ne.s32.totalorder %v44, 0
    %vm46 = vcmp.lt.s32.totalorder %v44, 0
    %vm47 = vmand %vm46, %vm45
    %v48 = vadd.s32 %v44, 8
    %v49 = vsel %vm47, %v48, %v44
    %vm50 = vcmp.lt.s32.totalorder %v49, 7
    %v51 = vld [vmem:[%s1] sm:$0xf]
    %v52 = vld [vmem:[%s1 + $0x4] sm:$0xf]
    %v53 = vld [vmem:[%s2] sm:$0xff]
    %v54 = vld [vmem:[%s2 + $0x8] sm:$0xff]
    %v55 = vld [vmem:[%s3] sm:$0xf]
    %v56 = vld [vmem:[%s4] sm:$0xff]
    %v57 = vld [vmem:[#allocation2] sm:$0xf]
    %s58 = scalar_lea.vmem [#allocation2], 4
    %v59 = vld [vmem:[%s58] sm:$0xf]
    %s60 = scalar_lea.vmem [#allocation2], 8
    %v61 = vld [vmem:[%s60] sm:$0xf]
    %s62 = scalar_lea.vmem [#allocation2], 12
    %v63 = vld [vmem:[%s62] sm:$0xf]
    %v65 = vrot.slane %v59, 4
    %68 = vrot.lane.b32.xlu0 %v57, 127
    %v69 = vpop.permute.xlu0 %68
    %v72 = vrot.slane %v61, 4
    %74 = vrot.lane.b32.xlu0 %v72, 127
    %v75 = vpop.permute.xlu0 %74
    %77 = vrot.lane.b32.xlu0 %v57, 120
    %v78 = vpop.permute.xlu0 %77
    %80 = vrot.lane.b32.xlu0 %v65, 120
    %v81 = vpop.permute.xlu0 %80
    %83 = vrot.lane.b32.xlu0 %v57, 119
    %v84 = vpop.permute.xlu0 %83
    %vm86 = vcmask 1043456
    %v87 = vsel %vm86, %v57, %v65
    %v88 = vsel %vm86, %v69, %v72
    %v89 = vsel %vm86, %v63, %v75
    %v90 = vsel %vm86, %v78, %v81
    %v91 = vpack.c.bf16 %v88, %v87
    %v92 = vpack.c.bf16 %v90, %v89
    %v93 = vpack.c.bf16 %v84, %v84
    %95 = vset.pattern.permute.xlu0 0
    %96 = vperm.xlu0 %95, %v53
    %v97 = vpop.permute.xlu0 %96
    %100 = vset.pattern.permute.xlu0 0
    %101 = vperm.xlu0 %100, %v54
    %v102 = vpop.permute.xlu0 %101
    %v106 = vunpack.c.l.b16 %v51
    %v107 = vunpack.c.l.b16 %v52
    %v108 = vpack.c.b16 %v107, %v106
    %vm109 = vcmask 293888
    %v111 = vsel %vm109, %v108, 0
    %vm113 = vcmask 1041408
    %v115 = vsel %vm113, %v93, 0
    %117 = vmatprep.subr.bf16.mxu0 0
    %118 = vmatpush1.bf16.msra.mxu0 0
    %119 = vmatprep.subr.bf16.mxu0 0
    %120 = vmatpush1.bf16.msra.mxu0 0
    %121 = vmatprep.subr.bf16.mxu0 0
    %122 = vmatpush1.bf16.msra.mxu0 0
    %123 = vmatprep.subr.bf16.mxu0 0
    %124 = vmatpush1.bf16.msra.mxu0 0
    %125 = vmatprep.subr.bf16.mxu0 0
    %126 = vmatpush1.bf16.msra.mxu0 0
    %127 = vmatprep.subr.bf16.mxu0 0
    %128 = vmatpush1.bf16.msra.mxu0 %v115
    %129 = vmatprep.subr.bf16.mxu0 0
    %130 = vmatpush1.bf16.msra.mxu0 %v92
    %131 = vmatprep.subr.bf16.mxu0 0
    %132 = vmatpush1.bf16.msra.mxu0 %v91
    %133 = vmatprep.subr.bf16.mxu0 0
    %134 = vmatpush2.bf16.msra.mxu0 0
    %135 = vmatprep.subr.bf16.mxu0 0
    %136 = vmatpush2.bf16.msra.mxu0 0
    %137 = vmatprep.subr.bf16.mxu0 0
    %138 = vmatpush2.bf16.msra.mxu0 0
    %139 = vmatprep.subr.bf16.mxu0 0
    %140 = vmatpush2.bf16.msra.mxu0 0
    %141 = vmatprep.subr.bf16.mxu0 0
    %142 = vmatpush2.bf16.msra.mxu0 0
    %143 = vmatprep.subr.bf16.mxu0 0
    %144 = vmatpush2.bf16.msra.mxu0 0
    %145 = vmatprep.subr.bf16.mxu0 0
    %146 = vmatpush2.bf16.msra.mxu0 0
    %147 = vmatprep.subr.bf16.mxu0 0
    %148 = vmatpush2.bf16.msra.mxu0 0
    %149 = vmatprep.mubr.bf16.mxu0 0
    %150 = vmatmul.mubr.bf16.gmra.mxu0 %v111
    %v151 = vpop.f32.mrf.mxu0
    %v152 = vadd.f32 %v97, %v151
    %v153 = vpop.f32.mrf.mxu0
    %v154 = vpop.f32.mrf.mxu0
    %v155 = vadd.f32 %v102, %v154
    %v156 = vpop.f32.mrf.mxu0
    %157 = vdwg.mxu0
    %v158 = vsel %vm50, 1, 0
    %vm159 = vcmp.eq.s32.totalorder %v158, 1
    %v160 = vsel %vm159, %v155, 0.0
    %162 = vrot.lane.b32.xlu0 %v160, 9
    %v163 = vpop.permute.xlu0 %162
    %vm165 = vcmask 72704
    %v166 = vsel %vm165, 0.0, %v163
    %vm167 = vcmask 531456
    %v168 = vsel %vm167, %v166, 0.0
    %170 = vrot.lane.b32.xlu0 %v168, 127
    %v171 = vpop.permute.xlu0 %170
    %173 = vrot.lane.b32.xlu0 %v168, 126
    %v174 = vpop.permute.xlu0 %173
    %176 = vrot.lane.b32.xlu0 %v168, 120
    %v177 = vpop.permute.xlu0 %176
    %179 = vrot.lane.b32.xlu0 %v168, 119
    %v180 = vpop.permute.xlu0 %179
    %182 = vrot.lane.b32.xlu0 %v168, 118
    %v183 = vpop.permute.xlu0 %182
    %185 = vrot.lane.b32.xlu0 %v168, 112
    %v186 = vpop.permute.xlu0 %185
    %188 = vrot.lane.b32.xlu0 %v168, 111
    %v189 = vpop.permute.xlu0 %188
    %191 = vrot.lane.b32.xlu0 %v168, 110
    %v192 = vpop.permute.xlu0 %191
    %v194 = vpack.c.bf16 %v171, %v168
    %v195 = vpack.c.bf16 %v177, %v174
    %v196 = vpack.c.bf16 %v183, %v180
    %v197 = vpack.c.bf16 %v189, %v186
    %v198 = vpack.c.bf16 %v192, %v192
    %200 = vset.pattern.permute.xlu0 0
    %201 = vperm.xlu0 %200, %v56
    %v202 = vpop.permute.xlu0 %201
    %vm204 = vcmask 588800
    %v206 = vsel %vm204, %v55, 0
    %v209 = vsel %vm86, %v198, 0
    %211 = vmatprep.subr.bf16.mxu0 0
    %212 = vmatpush1.bf16.msra.mxu0 0
    %213 = vmatprep.subr.bf16.mxu0 0
    %214 = vmatpush1.bf16.msra.mxu0 0
    %215 = vmatprep.subr.bf16.mxu0 0
    %216 = vmatpush1.bf16.msra.mxu0 0
    %217 = vmatprep.subr.bf16.mxu0 0
    %218 = vmatpush1.bf16.msra.mxu0 %v209
    %219 = vmatprep.subr.bf16.mxu0 0
    %220 = vmatpush1.bf16.msra.mxu0 %v197
    %221 = vmatprep.subr.bf16.mxu0 0
    %222 = vmatpush1.bf16.msra.mxu0 %v196
    %223 = vmatprep.subr.bf16.mxu0 0
    %224 = vmatpush1.bf16.msra.mxu0 %v195
    %225 = vmatprep.subr.bf16.mxu0 0
    %226 = vmatpush1.bf16.msra.mxu0 %v194
    %227 = vmatprep.subr.bf16.mxu0 0
    %228 = vmatpush2.bf16.msra.mxu0 0
    %229 = vmatprep.subr.bf16.mxu0 0
    %230 = vmatpush2.bf16.msra.mxu0 0
    %231 = vmatprep.subr.bf16.mxu0 0
    %232 = vmatpush2.bf16.msra.mxu0 0
    %233 = vmatprep.subr.bf16.mxu0 0
    %234 = vmatpush2.bf16.msra.mxu0 0
    %235 = vmatprep.subr.bf16.mxu0 0
    %236 = vmatpush2.bf16.msra.mxu0 0
    %237 = vmatprep.subr.bf16.mxu0 0
    %238 = vmatpush2.bf16.msra.mxu0 0
    %239 = vmatprep.subr.bf16.mxu0 0
    %240 = vmatpush2.bf16.msra.mxu0 0
    %241 = vmatprep.subr.bf16.mxu0 0
    %242 = vmatpush2.bf16.msra.mxu0 0
    %243 = vmatprep.mubr.bf16.mxu0 0
    %244 = vmatmul.mubr.bf16.gmra.mxu0 %v206
    %v245 = vpop.f32.mrf.mxu0
    %v246 = vadd.f32 %v202, %v245
    %v247 = vpop.f32.mrf.mxu0
    %v248 = vpop.f32.mrf.mxu0
    %v249 = vpop.f32.mrf.mxu0
    %250 = vdwg.mxu0
    %v251 = vadd.f32 %v152, %v246
    %vm252 = vcmask 457728
    %253 = vst.msk [vmem:[#allocation5] sm:$0xff] %vm252, %v251
    %s254 = scalar_lea.vmem [#allocation2], 16
    %v255 = vld [vmem:[%s254] sm:$0xf]
    %s256 = scalar_lea.vmem [#allocation2], 20
    %v257 = vld [vmem:[%s256] sm:$0xf]
    %s258 = scalar_lea.vmem [#allocation2], 24
    %v259 = vld [vmem:[%s258] sm:$0xf]
    %s260 = scalar_lea.vmem [#allocation2], 28
    %v261 = vld [vmem:[%s260] sm:$0xf]
    %v263 = vrot.slane %v257, 4
    %266 = vrot.lane.b32.xlu0 %v255, 127
    %v267 = vpop.permute.xlu0 %266
    %v270 = vrot.slane %v259, 4
    %272 = vrot.lane.b32.xlu0 %v270, 127
    %v273 = vpop.permute.xlu0 %272
    %275 = vrot.lane.b32.xlu0 %v255, 120
    %v276 = vpop.permute.xlu0 %275
    %278 = vrot.lane.b32.xlu0 %v263, 120
    %v279 = vpop.permute.xlu0 %278
    %281 = vrot.lane.b32.xlu0 %v255, 119
    %v282 = vpop.permute.xlu0 %281
    %v284 = vsel %vm86, %v255, %v263
    %v285 = vsel %vm86, %v267, %v270
    %v286 = vsel %vm86, %v261, %v273
    %v287 = vsel %vm86, %v276, %v279
    %v288 = vpack.c.bf16 %v285, %v284
    %v289 = vpack.c.bf16 %v287, %v286
    %v290 = vpack.c.bf16 %v282, %v282
    %v292 = vsel %vm113, %v290, 0
    %294 = vmatprep.subr.bf16.mxu0 0
    %295 = vmatpush1.bf16.msra.mxu0 0
    %296 = vmatprep.subr.bf16.mxu0 0
    %297 = vmatpush1.bf16.msra.mxu0 0
    %298 = vmatprep.subr.bf16.mxu0 0
    %299 = vmatpush1.bf16.msra.mxu0 0
    %300 = vmatprep.subr.bf16.mxu0 0
    %301 = vmatpush1.bf16.msra.mxu0 0
    %302 = vmatprep.subr.bf16.mxu0 0
    %303 = vmatpush1.bf16.msra.mxu0 0
    %304 = vmatprep.subr.bf16.mxu0 0
    %305 = vmatpush1.bf16.msra.mxu0 %v292
    %306 = vmatprep.subr.bf16.mxu0 0
    %307 = vmatpush1.bf16.msra.mxu0 %v289
    %308 = vmatprep.subr.bf16.mxu0 0
    %309 = vmatpush1.bf16.msra.mxu0 %v288
    %310 = vmatprep.subr.bf16.mxu0 0
    %311 = vmatpush2.bf16.msra.mxu0 0
    %312 = vmatprep.subr.bf16.mxu0 0
    %313 = vmatpush2.bf16.msra.mxu0 0
    %314 = vmatprep.subr.bf16.mxu0 0
    %315 = vmatpush2.bf16.msra.mxu0 0
    %316 = vmatprep.subr.bf16.mxu0 0
    %317 = vmatpush2.bf16.msra.mxu0 0
    %318 = vmatprep.subr.bf16.mxu0 0
    %319 = vmatpush2.bf16.msra.mxu0 0
    %320 = vmatprep.subr.bf16.mxu0 0
    %321 = vmatpush2.bf16.msra.mxu0 0
    %322 = vmatprep.subr.bf16.mxu0 0
    %323 = vmatpush2.bf16.msra.mxu0 0
    %324 = vmatprep.subr.bf16.mxu0 0
    %325 = vmatpush2.bf16.msra.mxu0 0
    %326 = vmatprep.mubr.bf16.mxu0 0
    %327 = vmatmul.mubr.bf16.gmra.mxu0 %v111
    %v328 = vpop.f32.mrf.mxu0
    %v329 = vadd.f32 %v97, %v328
    %v330 = vpop.f32.mrf.mxu0
    %v331 = vpop.f32.mrf.mxu0
    %v332 = vadd.f32 %v102, %v331
    %v333 = vpop.f32.mrf.mxu0
    %334 = vdwg.mxu0
    %v335 = vsel %vm159, %v332, 0.0
    %337 = vrot.lane.b32.xlu0 %v335, 9
    %v338 = vpop.permute.xlu0 %337
    %v340 = vsel %vm165, 0.0, %v338
    %v341 = vsel %vm167, %v340, 0.0
    %343 = vrot.lane.b32.xlu0 %v341, 127
    %v344 = vpop.permute.xlu0 %343
    %346 = vrot.lane.b32.xlu0 %v341, 126
    %v347 = vpop.permute.xlu0 %346
    %349 = vrot.lane.b32.xlu0 %v341, 120
    %v350 = vpop.permute.xlu0 %349
    %352 = vrot.lane.b32.xlu0 %v341, 119
    %v353 = vpop.permute.xlu0 %352
    %355 = vrot.lane.b32.xlu0 %v341, 118
    %v356 = vpop.permute.xlu0 %355
    %358 = vrot.lane.b32.xlu0 %v341, 112
    %v359 = vpop.permute.xlu0 %358
    %361 = vrot.lane.b32.xlu0 %v341, 111
    %v362 = vpop.permute.xlu0 %361
    %364 = vrot.lane.b32.xlu0 %v341, 110
    %v365 = vpop.permute.xlu0 %364
    %v367 = vpack.c.bf16 %v344, %v341
    %v368 = vpack.c.bf16 %v350, %v347
    %v369 = vpack.c.bf16 %v356, %v353
    %v370 = vpack.c.bf16 %v362, %v359
    %v371 = vpack.c.bf16 %v365, %v365
    %v373 = vsel %vm86, %v371, 0
    %375 = vmatprep.subr.bf16.mxu0 0
    %376 = vmatpush1.bf16.msra.mxu0 0
    %377 = vmatprep.subr.bf16.mxu0 0
    %378 = vmatpush1.bf16.msra.mxu0 0
    %379 = vmatprep.subr.bf16.mxu0 0
    %380 = vmatpush1.bf16.msra.mxu0 0
    %381 = vmatprep.subr.bf16.mxu0 0
    %382 = vmatpush1.bf16.msra.mxu0 %v373
    %383 = vmatprep.subr.bf16.mxu0 0
    %384 = vmatpush1.bf16.msra.mxu0 %v370
    %385 = vmatprep.subr.bf16.mxu0 0
    %386 = vmatpush1.bf16.msra.mxu0 %v369
    %387 = vmatprep.subr.bf16.mxu0 0
    %388 = vmatpush1.bf16.msra.mxu0 %v368
    %389 = vmatprep.subr.bf16.mxu0 0
    %390 = vmatpush1.bf16.msra.mxu0 %v367
    %391 = vmatprep.subr.bf16.mxu0 0
    %392 = vmatpush2.bf16.msra.mxu0 0
    %393 = vmatprep.subr.bf16.mxu0 0
    %394 = vmatpush2.bf16.msra.mxu0 0
    %395 = vmatprep.subr.bf16.mxu0 0
    %396 = vmatpush2.bf16.msra.mxu0 0
    %397 = vmatprep.subr.bf16.mxu0 0
    %398 = vmatpush2.bf16.msra.mxu0 0
    %399 = vmatprep.subr.bf16.mxu0 0
    %400 = vmatpush2.bf16.msra.mxu0 0
    %401 = vmatprep.subr.bf16.mxu0 0
    %402 = vmatpush2.bf16.msra.mxu0 0
    %403 = vmatprep.subr.bf16.mxu0 0
    %404 = vmatpush2.bf16.msra.mxu0 0
    %405 = vmatprep.subr.bf16.mxu0 0
    %406 = vmatpush2.bf16.msra.mxu0 0
    %407 = vmatprep.mubr.bf16.mxu0 0
    %408 = vmatmul.mubr.bf16.gmra.mxu0 %v206
    %v409 = vpop.f32.mrf.mxu0
    %v410 = vadd.f32 %v202, %v409
    %v411 = vpop.f32.mrf.mxu0
    %v412 = vpop.f32.mrf.mxu0
    %v413 = vpop.f32.mrf.mxu0
    %414 = vdwg.mxu0
    %v415 = vadd.f32 %v329, %v410
    %s416 = scalar_lea.vmem [#allocation5], 8
    %417 = vst.msk [vmem:[%s416] sm:$0xff] %vm252, %v415
    // Predicated region
    $region26: #{tpu_custom_call.1} parent=1 // pred_check
      _
    $region27: #{tpu_custom_call.1} parent=1 // pred_check_branch
      %419 = sbr.rel (0) target = $region29
    $region28: #{tpu_custom_call.1} parent=1 // pred_region
      %s421 = ssub.s32 256, 256
      %422 = vsyncadd [#allocation4], %s421
      %s423 = sshll.u32 [#allocation5], 4
      %s424 = int_to_ptr.vmem [resolvable:$true] %s423
      %429 = dma.vmem_to_hbm [thread:$0]  %s424, 256, %s5, [#allocation4], 128, 128, 8
    $region29: #{tpu_custom_call.1} parent=1 // pred_fallthru
      _
    // Predicated region
    $region30: #{tpu_custom_call.1} parent=1 // pred_check
      _
    $region31: #{tpu_custom_call.1} parent=1 // pred_check_branch
      %431 = sbr.rel (0) target = $region33
    $region32: #{tpu_custom_call.1} parent=1 // pred_region
      %432 = dma.done [#allocation4], 256
    $region33: #{tpu_custom_call.1} parent=1 // pred_fallthru
      _
    %433 = vsyncpa [#allocation3], 1
    %434 = vsyncpa [#allocation4], 1

</llo_original>
